<compile_context>
chip_gen: v5e
topology: v5e:2x2
jax: 0.10.0
libtpu: 0.0.40
codegen_flags: <defaults>
</compile_context>

<pallas_src>
import jax
import jax.numpy as jnp
from jax import lax
from jax.experimental import pallas as pl
from jax.experimental.pallas import tpu as pltpu


# ----------------------------- kernel helpers ------------------------------

def _erf_poly(x):
    # TODO(synk): lax.erf has no Mosaic lowering rule; use Abramowitz & Stegun
    # 7.1.26 polynomial erf (max abs err ~1.5e-7), matching nn.GELU() (exact
    # erf) to ~float32 precision.  The 1/(1+p|x|) term goes to the EUP approx
    # reciprocal (otherwise-idle slot) instead of a VALU divide.
    a1, a2, a3, a4, a5 = (0.254829592, -0.284496736, 1.421413741,
                          -1.453152027, 1.061405429)
    p = 0.3275911
    ax = jnp.abs(x)
    t = pl.reciprocal(1.0 + p * ax, approx=True)
    poly = t * (a1 + t * (a2 + t * (a3 + t * (a4 + t * a5))))
    e = 1.0 - poly * jnp.exp(-ax * ax)
    return jnp.where(x >= 0.0, e, -e)


def _gelu_exact(x):
    # nn.GELU() default: 0.5 * x * (1 + erf(x / sqrt(2)))
    return 0.5 * x * (1.0 + _erf_poly(x * 0.7071067811865476))


# --------------------------------- kernel ----------------------------------

def coord_resnet_kernel(feat_ref, pe_ref, w_in_ref, b_in_ref,
                        c1w_ref, c1b_ref, c2w_ref, c2b_ref,
                        w_out_ref, b_out_ref, out_ref, x_sc):
    l = pl.program_id(1)
    num_layers = pl.num_programs(1)
    R, E = x_sc.shape                  # R = bt * S packed rows
    bt, S, _ = out_ref.shape

    row = lax.broadcasted_iota(jnp.int32, (R, E), 0)
    seq = row % S                      # position within each packed sequence
    not_first = seq != 0
    not_last = seq != S - 1

    # ---- layer-0 prologue: input_proj(features) + pos_embed(positions) ----
    @pl.when(l == 0)
    def _():
        feat = feat_ref[...].reshape(R, feat_ref.shape[-1])      # bf16
        x = jnp.dot(feat, w_in_ref[...], preferred_element_type=jnp.float32)
        x_sc[...] = x + b_in_ref[...] + pe_ref[...].reshape(R, E)

    def conv1d(x, w_ref, b_ref):
        # Conv1d(E, E, kernel=3, padding=1) along the sequence axis as three
        # MXU matmuls on row-shifted activations, zero-padded per sequence.
        # BatchNorm (eval) is already folded into w_ref / b_ref by the wrapper.
        xm1 = jnp.where(not_first, pltpu.roll(x, shift=1, axis=0), 0.0)
        xp1 = jnp.where(not_last, pltpu.roll(x, shift=R - 1, axis=0), 0.0)
        y = jnp.dot(xm1.astype(jnp.bfloat16), w_ref[0, 0],
                    preferred_element_type=jnp.float32)
        y = y + jnp.dot(x.astype(jnp.bfloat16), w_ref[0, 1],
                        preferred_element_type=jnp.float32)
        y = y + jnp.dot(xp1.astype(jnp.bfloat16), w_ref[0, 2],
                        preferred_element_type=jnp.float32)
        return y + b_ref[0]

    # ---- one residual block per grid step along the layer ("arbitrary") axis
    x = x_sc[...]
    h = conv1d(x, c1w_ref, c1b_ref)
    h = _gelu_exact(h)                 # Dropout -> identity in eval mode
    h = conv1d(h, c2w_ref, c2b_ref)
    x_sc[...] = x + h                  # residual add

    # ---- last-layer epilogue: Linear(E, 2) head + _fix_coordinates ---------
    @pl.when(l == num_layers - 1)
    def _():
        out = jnp.dot(x_sc[...], w_out_ref[...],
                      preferred_element_type=jnp.float32)
        out = out + b_out_ref[...]                                # (R, 2)
        r2 = lax.broadcasted_iota(jnp.int32, (R, 2), 0) % S
        c2 = lax.broadcasted_iota(jnp.int32, (R, 2), 1)
        out = jnp.where(r2 == 0, 0.0, out)
        out = jnp.where(r2 == S - 1, jnp.where(c2 == 0, 600.0, 0.0), out)
        # TODO(synk): last-dim-2 store lowers to a masked vst; the slab is tiny
        # (8 KiB/seq) so only pad/transpose if it ever shows in a trace.
        out_ref[...] = out.reshape(bt, S, 2).astype(out_ref.dtype)


# -------------------------------- wrapper -----------------------------------

def _choose_batch_tile(B, S, target_rows=256):
    # Pack several sequences per tile so the matmul M dimension approaches an
    # MXU-friendly size at small S, but keep >= 2 batch tiles when possible so
    # the "parallel" batch axis can feed both v7x TensorCores.
    if S % 8 != 0:
        return 1                       # packed (bt*S, E) reshape needs 8-aligned S
    bt = max(1, min(B, target_rows // max(S, 1)))
    while bt > 1 and (B % bt != 0 or B // bt < 2):
        bt -= 1
    return bt


def coordinate_resnet_forward(features, positions, mask, params):
    del mask  # mask is an argument of the reference forward but never used
    B, S, Din = features.shape
    E = params["w_in"].shape[1]
    L = params["c1w"].shape[0]

    # Fold BatchNorm1d (eval, running stats) into the conv weights/bias, then
    # cast matmul weights and activations to bf16 (f32 accumulation in-kernel).
    c1w = (params["c1w"] * params["bn1_scale"][:, :, None, :]).astype(jnp.bfloat16)
    c1b = params["c1b"] * params["bn1_scale"] + params["bn1_shift"]
    c2w = (params["c2w"] * params["bn2_scale"][:, :, None, :]).astype(jnp.bfloat16)
    c2b = params["c2b"] * params["bn2_scale"] + params["bn2_shift"]
    w_in = params["w_in"].astype(jnp.bfloat16)
    feat = features.astype(jnp.bfloat16)

    # Embedding gather stays in the wrapper (glue); the hot path is in-kernel.
    # TODO(synk): for batch-heavy memory-bound serving, pass the (600, E) table
    # plus positions via scalar prefetch instead of materializing (B,S,E) here.
    pe = jnp.take(params["pos_embed"], positions, axis=0)        # (B, S, E) f32

    bt = _choose_batch_tile(B, S)
    nb = B // bt

    out = pl.pallas_call(
        coord_resnet_kernel,
        out_shape=jax.ShapeDtypeStruct((B, S, 2), jnp.float32),
        grid_spec=pltpu.PrefetchScalarGridSpec(
            num_scalar_prefetch=0,
            # Layer axis in the grid: conv weights streamed one layer at a time
            # instead of keeping all L layers resident in VMEM.
            grid=(nb, L),
            in_specs=[
                pl.BlockSpec((bt, S, Din), lambda b, l: (b, 0, 0)),    # features
                pl.BlockSpec((bt, S, E), lambda b, l: (b, 0, 0)),      # pos emb
                pl.BlockSpec((Din, E), lambda b, l: (0, 0)),           # w_in
                pl.BlockSpec((1, E), lambda b, l: (0, 0)),             # b_in
                pl.BlockSpec((1, 3, E, E), lambda b, l: (l, 0, 0, 0)),  # conv1 W
                pl.BlockSpec((1, 1, E), lambda b, l: (l, 0, 0)),        # conv1 b
                pl.BlockSpec((1, 3, E, E), lambda b, l: (l, 0, 0, 0)),  # conv2 W
                pl.BlockSpec((1, 1, E), lambda b, l: (l, 0, 0)),        # conv2 b
                pl.BlockSpec((E, 2), lambda b, l: (0, 0)),             # w_out
                pl.BlockSpec((1, 2), lambda b, l: (0, 0)),             # b_out
            ],
            out_specs=pl.BlockSpec((bt, S, 2), lambda b, l: (b, 0, 0)),
            scratch_shapes=[pltpu.VMEM((bt * S, E), jnp.float32)],
        ),
        compiler_params=pltpu.CompilerParams(
            # Batch tiles parallel (megacore on v7x); layer axis carries x_sc
            # state across grid steps so it must stay "arbitrary".
            dimension_semantics=("parallel", "arbitrary"),
            # Default scoped VMEM (16/32 MiB) is too small for double-buffered
            # streamed bf16 conv weights at module-default E=1024; 64 MiB fits
            # every generation (v5e/v6e 128 MiB, v7x 64 MiB physical).
            vmem_limit_bytes=64 * 1024 * 1024,
        ),
    )(feat, pe, w_in, params["b_in"], c1w, c1b, c2w, c2b,
      params["w_out"], params["b_out"])
    return out


# --------------------------- parameter construction -------------------------

def init_params(key, input_dim, embed_dim, num_layers):
    ks = jax.random.split(key, 20)
    eps = 1e-5

    def rnd(k, shape, scale=0.02):
        return scale * jax.random.normal(k, shape, dtype=jnp.float32)

    def make_bn(kg, kb, km, kv):
        gamma = 1.0 + rnd(kg, (num_layers, 1, embed_dim), 0.1)
        beta = rnd(kb, (num_layers, 1, embed_dim), 0.1)
        mean = rnd(km, (num_layers, 1, embed_dim), 0.1)
        var = jnp.abs(1.0 + rnd(kv, (num_layers, 1, embed_dim), 0.1))
        scale = gamma / jnp.sqrt(var + eps)
        shift = beta - mean * scale
        return scale, shift

    bn1_scale, bn1_shift = make_bn(ks[6], ks[7], ks[8], ks[9])
    bn2_scale, bn2_shift = make_bn(ks[10], ks[11], ks[12], ks[13])

    # Conv weights stored as (L, K=3, C_in, C_out) so the kernel does x @ w[k].
    return {
        "pos_embed": rnd(ks[0], (600, embed_dim), 1.0),           # nn.Embedding(600, E)
        "w_in": rnd(ks[1], (input_dim, embed_dim)),               # Linear(Din, E)
        "b_in": rnd(ks[2], (1, embed_dim)),
        "c1w": rnd(ks[3], (num_layers, 3, embed_dim, embed_dim)),
        "c1b": rnd(ks[4], (num_layers, 1, embed_dim)),
        "bn1_scale": bn1_scale,
        "bn1_shift": bn1_shift,
        "c2w": rnd(ks[14], (num_layers, 3, embed_dim, embed_dim)),
        "c2b": rnd(ks[15], (num_layers, 1, embed_dim)),
        "bn2_scale": bn2_scale,
        "bn2_shift": bn2_shift,
        "w_out": rnd(ks[16], (embed_dim, 2)),                     # Linear(E, 2)
        "b_out": rnd(ks[17], (1, 2)),
    }


# ------------------------------ pure-JAX reference ---------------------------

def reference_forward(features, positions, mask, params):
    # Full-f32, un-fused reference (exact model semantics in eval mode).
    del mask
    x = (features @ params["w_in"] + params["b_in"]
         + params["pos_embed"][positions])

    def conv1d(x, w3, b):
        xm1 = jnp.pad(x, ((0, 0), (1, 0), (0, 0)))[:, :-1]
        xp1 = jnp.pad(x, ((0, 0), (0, 1), (0, 0)))[:, 1:]
        return xm1 @ w3[0] + x @ w3[1] + xp1 @ w3[2] + b

    L = params["c1w"].shape[0]
    for l in range(L):
        h = conv1d(x, params["c1w"][l], params["c1b"][l])
        h = h * params["bn1_scale"][l] + params["bn1_shift"][l]
        h = jax.nn.gelu(h, approximate=False)
        h = conv1d(h, params["c2w"][l], params["c2b"][l])
        h = h * params["bn2_scale"][l] + params["bn2_shift"][l]
        x = x + h
    out = x @ params["w_out"] + params["b_out"]
    out = out.at[:, 0, :].set(jnp.array([0.0, 0.0], jnp.float32))
    out = out.at[:, -1, :].set(jnp.array([600.0, 0.0], jnp.float32))
    return out


# ----------------------------------- main ------------------------------------

if __name__ == "__main__":
    B, S, Din, E, L = 2, 16, 64, 128, 4   # small shapes (module default: 1024/1024/8)

    key = jax.random.PRNGKey(0)
    kf, kp, kw = jax.random.split(key, 3)
    features = jax.random.normal(kf, (B, S, Din), dtype=jnp.float32)
    positions = jax.random.randint(kp, (B, S), 0, 600, dtype=jnp.int32)
    mask = jnp.ones((B, S), dtype=jnp.bool_)
    params = init_params(kw, Din, E, L)

    out = coordinate_resnet_forward(features, positions, mask, params)
    out = jax.block_until_ready(out)

    ref = reference_forward(features, positions, mask, params)
    assert out.shape == (B, S, 2)
    # Tolerance covers bf16 matmul inputs (f32 accumulation) + approx-recip erf.
    assert jnp.allclose(out, ref, atol=2e-2, rtol=2e-2), (
        float(jnp.max(jnp.abs(out - ref))))

    print("KERNEL_OK")
</pallas_src>

<mosaic_0001>
module attributes {stable_mosaic.version = 11 : i64} {
  func.func @coord_resnet_kernel(%arg0: i32, %arg1: i32, %arg2: memref<1x16x64xbf16, #tpu.memory_space<vmem>>, %arg3: memref<1x16x128xf32, #tpu.memory_space<vmem>>, %arg4: memref<64x128xbf16, #tpu.memory_space<vmem>>, %arg5: memref<1x128xf32, #tpu.memory_space<vmem>>, %arg6: memref<1x3x128x128xbf16, #tpu.memory_space<vmem>>, %arg7: memref<1x1x128xf32, #tpu.memory_space<vmem>>, %arg8: memref<1x3x128x128xbf16, #tpu.memory_space<vmem>>, %arg9: memref<1x1x128xf32, #tpu.memory_space<vmem>>, %arg10: memref<128x2xf32, #tpu.memory_space<vmem>>, %arg11: memref<1x2xf32, #tpu.memory_space<vmem>>, %arg12: memref<1x16x2xf32, #tpu.memory_space<vmem>>, %arg13: memref<16x128xf32, #tpu.memory_space<vmem>>) attributes {dimension_semantics = [#tpu.dimension_semantics<parallel>, #tpu.dimension_semantics<arbitrary>], iteration_bounds = array<i64: 2, 4>, scalar_prefetch = 0 : i64, scratch_operands = 1 : i64, tpu.core_type = #tpu.core_type<tc>, window_params = [{transform_indices = @transform_0, window_bounds = array<i64: 1, 16, 64>}, {transform_indices = @transform_1, window_bounds = array<i64: 1, 16, 128>}, {pipeline_mode = #tpu.pipeline_mode<synchronous>, transform_indices = @transform_2, window_bounds = array<i64: 64, 128>}, {pipeline_mode = #tpu.pipeline_mode<synchronous>, transform_indices = @transform_3, window_bounds = array<i64: 1, 128>}, {transform_indices = @transform_4, window_bounds = array<i64: 1, 3, 128, 128>}, {transform_indices = @transform_5, window_bounds = array<i64: 1, 1, 128>}, {transform_indices = @transform_6, window_bounds = array<i64: 1, 3, 128, 128>}, {transform_indices = @transform_7, window_bounds = array<i64: 1, 1, 128>}, {pipeline_mode = #tpu.pipeline_mode<synchronous>, transform_indices = @transform_8, window_bounds = array<i64: 128, 2>}, {pipeline_mode = #tpu.pipeline_mode<synchronous>, transform_indices = @transform_9, window_bounds = array<i64: 1, 2>}, {transform_indices = @transform_10, window_bounds = array<i64: 1, 16, 2>}]} {
    %0 = tpu.iota {dimensions = array<i32: 0>} : vector<16x128xi32>
    %c16_i32 = arith.constant 16 : i32
    %c0_i32 = arith.constant 0 : i32
    %1 = arith.cmpi eq, %c16_i32, %c0_i32 : i32
    %c1_i32 = arith.constant 1 : i32
    %2 = arith.select %1, %c1_i32, %c16_i32 : i32
    %3 = vector.broadcast %2 : i32 to vector<16x128xi32>
    %4 = arith.remsi %0, %3 : vector<16x128xi32>
    %c0_i32_0 = arith.constant 0 : i32
    %5 = vector.broadcast %c0_i32_0 : i32 to vector<16x128xi32>
    %6 = arith.cmpi ne, %4, %5 : vector<16x128xi32>
    %c0_i32_1 = arith.constant 0 : i32
    %7 = vector.broadcast %c0_i32_1 : i32 to vector<16x128xi32>
    %8 = arith.cmpi slt, %4, %7 : vector<16x128xi32>
    %c0_i32_2 = arith.constant 0 : i32
    %9 = arith.cmpi slt, %2, %c0_i32_2 : i32
    %10 = vector.broadcast %9 : i1 to vector<16x128xi1>
    %11 = vector.broadcast %10 : vector<16x128xi1> to vector<16x128xi1>
    %12 = arith.xori %8, %11 : vector<16x128xi1>
    %13 = arith.andi %12, %6 : vector<16x128xi1>
    %14 = vector.broadcast %2 : i32 to vector<16x128xi32>
    %15 = arith.addi %4, %14 : vector<16x128xi32>
    %16 = arith.select %13, %15, %4 : vector<16x128xi1>, vector<16x128xi32>
    %c0_i32_3 = arith.constant 0 : i32
    %17 = vector.broadcast %c0_i32_3 : i32 to vector<16x128xi32>
    %18 = arith.cmpi ne, %16, %17 : vector<16x128xi32>
    %c15_i32 = arith.constant 15 : i32
    %19 = vector.broadcast %c15_i32 : i32 to vector<16x128xi32>
    %20 = arith.cmpi ne, %16, %19 : vector<16x128xi32>
    %c0_i32_4 = arith.constant 0 : i32
    %21 = arith.cmpi eq, %arg1, %c0_i32_4 : i32
    %22 = arith.extui %21 : i1 to i32
    %c0_i32_5 = arith.constant 0 : i32
    %23 = arith.cmpi ne, %22, %c0_i32_5 : i32
    scf.if %23 {
      %c0_65 = arith.constant 0 : index
      %c0_66 = arith.constant 0 : index
      %c0_67 = arith.constant 0 : index
      %117 = vector.load %arg2[%c0_65, %c0_66, %c0_67] : memref<1x16x64xbf16, #tpu.memory_space<vmem>>, vector<1x16x64xbf16>
      %118 = vector.shape_cast %117 : vector<1x16x64xbf16> to vector<16x64xbf16>
      %c0_68 = arith.constant 0 : index
      %c0_69 = arith.constant 0 : index
      %119 = vector.load %arg4[%c0_68, %c0_69] : memref<64x128xbf16, #tpu.memory_space<vmem>>, vector<64x128xbf16>
      %cst_70 = arith.constant dense<0.000000e+00> : vector<16x128xf32>
      %120 = tpu.matmul %118, %119, %cst_70 {dimension_numbers = #tpu.dot_dimension_numbers<[1], [0], [0], [1], [0, 0, 1, 1], [], []>} : vector<16x64xbf16>, vector<64x128xbf16>, vector<16x128xf32> -> vector<16x128xf32>
      %c0_71 = arith.constant 0 : index
      %c0_72 = arith.constant 0 : index
      %121 = vector.load %arg5[%c0_71, %c0_72] : memref<1x128xf32, #tpu.memory_space<vmem>>, vector<1x128xf32>
      %122 = vector.broadcast %121 : vector<1x128xf32> to vector<16x128xf32>
      %123 = arith.addf %120, %122 : vector<16x128xf32>
      %c0_73 = arith.constant 0 : index
      %c0_74 = arith.constant 0 : index
      %c0_75 = arith.constant 0 : index
      %124 = vector.load %arg3[%c0_73, %c0_74, %c0_75] : memref<1x16x128xf32, #tpu.memory_space<vmem>>, vector<1x16x128xf32>
      %125 = vector.shape_cast %124 : vector<1x16x128xf32> to vector<16x128xf32>
      %126 = arith.addf %123, %125 : vector<16x128xf32>
      %c0_76 = arith.constant 0 : index
      %c0_77 = arith.constant 0 : index
      %127 = vector.load %arg13[%c0_76, %c0_77] : memref<16x128xf32, #tpu.memory_space<vmem>>, vector<16x128xf32>
      tpu.vector_store %arg13[%c0_76, %c0_77], %126 {strides = array<i32>} : memref<16x128xf32, #tpu.memory_space<vmem>>, vector<16x128xf32>,
    } else {
    }
    %c0 = arith.constant 0 : index
    %c0_6 = arith.constant 0 : index
    %24 = vector.load %arg13[%c0, %c0_6] : memref<16x128xf32, #tpu.memory_space<vmem>>, vector<16x128xf32>
    %c1_i32_7 = arith.constant 1 : i32
    %25 = tpu.dynamic_rotate %24 by %c1_i32_7 dim 0 : vector<16x128xf32>, i32 -> vector<16x128xf32>
    %cst = arith.constant 0.000000e+00 : f32
    %26 = vector.broadcast %cst : f32 to vector<16x128xf32>
    %27 = arith.select %18, %25, %26 : vector<16x128xi1>, vector<16x128xf32>
    %c15_i32_8 = arith.constant 15 : i32
    %28 = tpu.dynamic_rotate %24 by %c15_i32_8 dim 0 : vector<16x128xf32>, i32 -> vector<16x128xf32>
    %cst_9 = arith.constant 0.000000e+00 : f32
    %29 = vector.broadcast %cst_9 : f32 to vector<16x128xf32>
    %30 = arith.select %20, %28, %29 : vector<16x128xi1>, vector<16x128xf32>
    %31 = arith.truncf %27 : vector<16x128xf32> to vector<16x128xbf16>
    %c0_10 = arith.constant 0 : index
    %c0_11 = arith.constant 0 : index
    %c0_12 = arith.constant 0 : index
    %c0_13 = arith.constant 0 : index
    %32 = vector.load %arg6[%c0_10, %c0_11, %c0_12, %c0_13] : memref<1x3x128x128xbf16, #tpu.memory_space<vmem>>, vector<1x1x128x128xbf16>
    %33 = vector.shape_cast %32 : vector<1x1x128x128xbf16> to vector<128x128xbf16>
    %cst_14 = arith.constant dense<0.000000e+00> : vector<16x128xf32>
    %34 = tpu.matmul %31, %33, %cst_14 {dimension_numbers = #tpu.dot_dimension_numbers<[1], [0], [0], [1], [0, 0, 1, 1], [], []>} : vector<16x128xbf16>, vector<128x128xbf16>, vector<16x128xf32> -> vector<16x128xf32>
    %35 = arith.truncf %24 : vector<16x128xf32> to vector<16x128xbf16>
    %c0_15 = arith.constant 0 : index
    %c1 = arith.constant 1 : index
    %c0_16 = arith.constant 0 : index
    %c0_17 = arith.constant 0 : index
    %36 = vector.load %arg6[%c0_15, %c1, %c0_16, %c0_17] : memref<1x3x128x128xbf16, #tpu.memory_space<vmem>>, vector<1x1x128x128xbf16>
    %37 = vector.shape_cast %36 : vector<1x1x128x128xbf16> to vector<128x128xbf16>
    %cst_18 = arith.constant dense<0.000000e+00> : vector<16x128xf32>
    %38 = tpu.matmul %35, %37, %cst_18 {dimension_numbers = #tpu.dot_dimension_numbers<[1], [0], [0], [1], [0, 0, 1, 1], [], []>} : vector<16x128xbf16>, vector<128x128xbf16>, vector<16x128xf32> -> vector<16x128xf32>
    %39 = arith.addf %34, %38 : vector<16x128xf32>
    %40 = arith.truncf %30 : vector<16x128xf32> to vector<16x128xbf16>
    %c0_19 = arith.constant 0 : index
    %c2 = arith.constant 2 : index
    %c0_20 = arith.constant 0 : index
    %c0_21 = arith.constant 0 : index
    %41 = vector.load %arg6[%c0_19, %c2, %c0_20, %c0_21] : memref<1x3x128x128xbf16, #tpu.memory_space<vmem>>, vector<1x1x128x128xbf16>
    %42 = vector.shape_cast %41 : vector<1x1x128x128xbf16> to vector<128x128xbf16>
    %cst_22 = arith.constant dense<0.000000e+00> : vector<16x128xf32>
    %43 = tpu.matmul %40, %42, %cst_22 {dimension_numbers = #tpu.dot_dimension_numbers<[1], [0], [0], [1], [0, 0, 1, 1], [], []>} : vector<16x128xbf16>, vector<128x128xbf16>, vector<16x128xf32> -> vector<16x128xf32>
    %44 = arith.addf %39, %43 : vector<16x128xf32>
    %c0_23 = arith.constant 0 : index
    %c0_24 = arith.constant 0 : index
    %c0_25 = arith.constant 0 : index
    %45 = vector.load %arg7[%c0_23, %c0_24, %c0_25] : memref<1x1x128xf32, #tpu.memory_space<vmem>>, vector<1x1x128xf32>
    %46 = vector.shape_cast %45 : vector<1x1x128xf32> to vector<1x128xf32>
    %47 = vector.broadcast %46 : vector<1x128xf32> to vector<16x128xf32>
    %48 = arith.addf %44, %47 : vector<16x128xf32>
    %cst_26 = arith.constant 5.000000e-01 : f32
    %49 = vector.broadcast %cst_26 : f32 to vector<16x128xf32>
    %50 = arith.mulf %49, %48 : vector<16x128xf32>
    %cst_27 = arith.constant 0.707106769 : f32
    %51 = vector.broadcast %cst_27 : f32 to vector<16x128xf32>
    %52 = arith.mulf %48, %51 : vector<16x128xf32>
    %53 = math.absf %52 : vector<16x128xf32>
    %cst_28 = arith.constant 0.327591091 : f32
    %54 = vector.broadcast %cst_28 : f32 to vector<16x128xf32>
    %55 = arith.mulf %54, %53 : vector<16x128xf32>
    %cst_29 = arith.constant 1.000000e+00 : f32
    %56 = vector.broadcast %cst_29 : f32 to vector<16x128xf32>
    %57 = arith.addf %56, %55 : vector<16x128xf32>
    %58 = tpu.reciprocal %57 {approx = true} : vector<16x128xf32> -> vector<16x128xf32>
    %cst_30 = arith.constant 1.06140542 : f32
    %59 = vector.broadcast %cst_30 : f32 to vector<16x128xf32>
    %60 = arith.mulf %58, %59 : vector<16x128xf32>
    %cst_31 = arith.constant -1.45315206 : f32
    %61 = vector.broadcast %cst_31 : f32 to vector<16x128xf32>
    %62 = arith.addf %61, %60 : vector<16x128xf32>
    %63 = arith.mulf %58, %62 : vector<16x128xf32>
    %cst_32 = arith.constant 1.42141378 : f32
    %64 = vector.broadcast %cst_32 : f32 to vector<16x128xf32>
    %65 = arith.addf %64, %63 : vector<16x128xf32>
    %66 = arith.mulf %58, %65 : vector<16x128xf32>
    %cst_33 = arith.constant -0.284496725 : f32
    %67 = vector.broadcast %cst_33 : f32 to vector<16x128xf32>
    %68 = arith.addf %67, %66 : vector<16x128xf32>
    %69 = arith.mulf %58, %68 : vector<16x128xf32>
    %cst_34 = arith.constant 0.254829586 : f32
    %70 = vector.broadcast %cst_34 : f32 to vector<16x128xf32>
    %71 = arith.addf %70, %69 : vector<16x128xf32>
    %72 = arith.mulf %58, %71 : vector<16x128xf32>
    %cst_35 = arith.constant 0.000000e+00 : f32
    %73 = vector.broadcast %cst_35 : f32 to vector<16x128xf32>
    %74 = arith.subf %73, %53 : vector<16x128xf32>
    %75 = arith.mulf %74, %53 : vector<16x128xf32>
    %76 = math.exp %75 : vector<16x128xf32>
    %77 = arith.mulf %72, %76 : vector<16x128xf32>
    %cst_36 = arith.constant 1.000000e+00 : f32
    %78 = vector.broadcast %cst_36 : f32 to vector<16x128xf32>
    %79 = arith.subf %78, %77 : vector<16x128xf32>
    %cst_37 = arith.constant 0.000000e+00 : f32
    %80 = vector.broadcast %cst_37 : f32 to vector<16x128xf32>
    %81 = arith.cmpf oge, %52, %80 : vector<16x128xf32>
    %cst_38 = arith.constant 0.000000e+00 : f32
    %82 = vector.broadcast %cst_38 : f32 to vector<16x128xf32>
    %83 = arith.subf %82, %79 : vector<16x128xf32>
    %84 = arith.select %81, %79, %83 : vector<16x128xi1>, vector<16x128xf32>
    %cst_39 = arith.constant 1.000000e+00 : f32
    %85 = vector.broadcast %cst_39 : f32 to vector<16x128xf32>
    %86 = arith.addf %85, %84 : vector<16x128xf32>
    %87 = arith.mulf %50, %86 : vector<16x128xf32>
    %c1_i32_40 = arith.constant 1 : i32
    %88 = tpu.dynamic_rotate %87 by %c1_i32_40 dim 0 : vector<16x128xf32>, i32 -> vector<16x128xf32>
    %cst_41 = arith.constant 0.000000e+00 : f32
    %89 = vector.broadcast %cst_41 : f32 to vector<16x128xf32>
    %90 = arith.select %18, %88, %89 : vector<16x128xi1>, vector<16x128xf32>
    %c15_i32_42 = arith.constant 15 : i32
    %91 = tpu.dynamic_rotate %87 by %c15_i32_42 dim 0 : vector<16x128xf32>, i32 -> vector<16x128xf32>
    %cst_43 = arith.constant 0.000000e+00 : f32
    %92 = vector.broadcast %cst_43 : f32 to vector<16x128xf32>
    %93 = arith.select %20, %91, %92 : vector<16x128xi1>, vector<16x128xf32>
    %94 = arith.truncf %90 : vector<16x128xf32> to vector<16x128xbf16>
    %c0_44 = arith.constant 0 : index
    %c0_45 = arith.constant 0 : index
    %c0_46 = arith.constant 0 : index
    %c0_47 = arith.constant 0 : index
    %95 = vector.load %arg8[%c0_44, %c0_45, %c0_46, %c0_47] : memref<1x3x128x128xbf16, #tpu.memory_space<vmem>>, vector<1x1x128x128xbf16>
    %96 = vector.shape_cast %95 : vector<1x1x128x128xbf16> to vector<128x128xbf16>
    %cst_48 = arith.constant dense<0.000000e+00> : vector<16x128xf32>
    %97 = tpu.matmul %94, %96, %cst_48 {dimension_numbers = #tpu.dot_dimension_numbers<[1], [0], [0], [1], [0, 0, 1, 1], [], []>} : vector<16x128xbf16>, vector<128x128xbf16>, vector<16x128xf32> -> vector<16x128xf32>
    %98 = arith.truncf %87 : vector<16x128xf32> to vector<16x128xbf16>
    %c0_49 = arith.constant 0 : index
    %c1_50 = arith.constant 1 : index
    %c0_51 = arith.constant 0 : index
    %c0_52 = arith.constant 0 : index
    %99 = vector.load %arg8[%c0_49, %c1_50, %c0_51, %c0_52] : memref<1x3x128x128xbf16, #tpu.memory_space<vmem>>, vector<1x1x128x128xbf16>
    %100 = vector.shape_cast %99 : vector<1x1x128x128xbf16> to vector<128x128xbf16>
    %cst_53 = arith.constant dense<0.000000e+00> : vector<16x128xf32>
    %101 = tpu.matmul %98, %100, %cst_53 {dimension_numbers = #tpu.dot_dimension_numbers<[1], [0], [0], [1], [0, 0, 1, 1], [], []>} : vector<16x128xbf16>, vector<128x128xbf16>, vector<16x128xf32> -> vector<16x128xf32>
    %102 = arith.addf %97, %101 : vector<16x128xf32>
    %103 = arith.truncf %93 : vector<16x128xf32> to vector<16x128xbf16>
    %c0_54 = arith.constant 0 : index
    %c2_55 = arith.constant 2 : index
    %c0_56 = arith.constant 0 : index
    %c0_57 = arith.constant 0 : index
    %104 = vector.load %arg8[%c0_54, %c2_55, %c0_56, %c0_57] : memref<1x3x128x128xbf16, #tpu.memory_space<vmem>>, vector<1x1x128x128xbf16>
    %105 = vector.shape_cast %104 : vector<1x1x128x128xbf16> to vector<128x128xbf16>
    %cst_58 = arith.constant dense<0.000000e+00> : vector<16x128xf32>
    %106 = tpu.matmul %103, %105, %cst_58 {dimension_numbers = #tpu.dot_dimension_numbers<[1], [0], [0], [1], [0, 0, 1, 1], [], []>} : vector<16x128xbf16>, vector<128x128xbf16>, vector<16x128xf32> -> vector<16x128xf32>
    %107 = arith.addf %102, %106 : vector<16x128xf32>
    %c0_59 = arith.constant 0 : index
    %c0_60 = arith.constant 0 : index
    %c0_61 = arith.constant 0 : index
    %108 = vector.load %arg9[%c0_59, %c0_60, %c0_61] : memref<1x1x128xf32, #tpu.memory_space<vmem>>, vector<1x1x128xf32>
    %109 = vector.shape_cast %108 : vector<1x1x128xf32> to vector<1x128xf32>
    %110 = vector.broadcast %109 : vector<1x128xf32> to vector<16x128xf32>
    %111 = arith.addf %107, %110 : vector<16x128xf32>
    %112 = arith.addf %24, %111 : vector<16x128xf32>
    %c0_62 = arith.constant 0 : index
    %c0_63 = arith.constant 0 : index
    %113 = vector.load %arg13[%c0_62, %c0_63] : memref<16x128xf32, #tpu.memory_space<vmem>>, vector<16x128xf32>
    tpu.vector_store %arg13[%c0_62, %c0_63], %112 {strides = array<i32>} : memref<16x128xf32, #tpu.memory_space<vmem>>, vector<16x128xf32>,
    %c3_i32 = arith.constant 3 : i32
    %114 = arith.cmpi eq, %arg1, %c3_i32 : i32
    %115 = arith.extui %114 : i1 to i32
    %c0_i32_64 = arith.constant 0 : i32
    %116 = arith.cmpi ne, %115, %c0_i32_64 : i32
    scf.if %116 {
      %c0_65 = arith.constant 0 : index
      %c0_66 = arith.constant 0 : index
      %117 = vector.load %arg13[%c0_65, %c0_66] : memref<16x128xf32, #tpu.memory_space<vmem>>, vector<16x128xf32>
      %c0_67 = arith.constant 0 : index
      %c0_68 = arith.constant 0 : index
      %118 = vector.load %arg10[%c0_67, %c0_68] : memref<128x2xf32, #tpu.memory_space<vmem>>, vector<128x2xf32>
      %cst_69 = arith.constant dense<0.000000e+00> : vector<16x2xf32>
      %119 = tpu.matmul %117, %118, %cst_69 {dimension_numbers = #tpu.dot_dimension_numbers<[1], [0], [0], [1], [0, 0, 1, 1], [], []>} : vector<16x128xf32>, vector<128x2xf32>, vector<16x2xf32> -> vector<16x2xf32>
      %c0_70 = arith.constant 0 : index
      %c0_71 = arith.constant 0 : index
      %120 = vector.load %arg11[%c0_70, %c0_71] : memref<1x2xf32, #tpu.memory_space<vmem>>, vector<1x2xf32>
      %121 = vector.broadcast %120 : vector<1x2xf32> to vector<16x2xf32>
      %122 = arith.addf %119, %121 : vector<16x2xf32>
      %123 = tpu.iota {dimensions = array<i32: 0>} : vector<16x2xi32>
      %c16_i32_72 = arith.constant 16 : i32
      %c0_i32_73 = arith.constant 0 : i32
      %124 = arith.cmpi eq, %c16_i32_72, %c0_i32_73 : i32
      %c1_i32_74 = arith.constant 1 : i32
      %125 = arith.select %124, %c1_i32_74, %c16_i32_72 : i32
      %126 = vector.broadcast %125 : i32 to vector<16x2xi32>
      %127 = arith.remsi %123, %126 : vector<16x2xi32>
      %c0_i32_75 = arith.constant 0 : i32
      %128 = vector.broadcast %c0_i32_75 : i32 to vector<16x2xi32>
      %129 = arith.cmpi ne, %127, %128 : vector<16x2xi32>
      %c0_i32_76 = arith.constant 0 : i32
      %130 = vector.broadcast %c0_i32_76 : i32 to vector<16x2xi32>
      %131 = arith.cmpi slt, %127, %130 : vector<16x2xi32>
      %c0_i32_77 = arith.constant 0 : i32
      %132 = arith.cmpi slt, %125, %c0_i32_77 : i32
      %133 = vector.broadcast %132 : i1 to vector<16x2xi1>
      %134 = vector.broadcast %133 : vector<16x2xi1> to vector<16x2xi1>
      %135 = arith.xori %131, %134 : vector<16x2xi1>
      %136 = arith.andi %135, %129 : vector<16x2xi1>
      %137 = vector.broadcast %125 : i32 to vector<16x2xi32>
      %138 = arith.addi %127, %137 : vector<16x2xi32>
      %139 = arith.select %136, %138, %127 : vector<16x2xi1>, vector<16x2xi32>
      %140 = tpu.iota {dimensions = array<i32: 1>} : vector<16x2xi32>
      %c0_i32_78 = arith.constant 0 : i32
      %141 = vector.broadcast %c0_i32_78 : i32 to vector<16x2xi32>
      %142 = arith.cmpi eq, %139, %141 : vector<16x2xi32>
      %cst_79 = arith.constant 0.000000e+00 : f32
      %143 = vector.broadcast %cst_79 : f32 to vector<16x2xf32>
      %144 = arith.select %142, %143, %122 : vector<16x2xi1>, vector<16x2xf32>
      %c15_i32_80 = arith.constant 15 : i32
      %145 = vector.broadcast %c15_i32_80 : i32 to vector<16x2xi32>
      %146 = arith.cmpi eq, %139, %145 : vector<16x2xi32>
      %c0_i32_81 = arith.constant 0 : i32
      %147 = vector.broadcast %c0_i32_81 : i32 to vector<16x2xi32>
      %148 = arith.cmpi eq, %140, %147 : vector<16x2xi32>
      %cst_82 = arith.constant 6.000000e+02 : f32
      %cst_83 = arith.constant 0.000000e+00 : f32
      %149 = vector.broadcast %cst_82 : f32 to vector<16x2xf32>
      %150 = vector.broadcast %cst_83 : f32 to vector<16x2xf32>
      %151 = arith.select %148, %149, %150 : vector<16x2xi1>, vector<16x2xf32>
      %152 = arith.select %146, %151, %144 : vector<16x2xi1>, vector<16x2xf32>
      %153 = vector.shape_cast %152 : vector<16x2xf32> to vector<1x16x2xf32>
      %c0_84 = arith.constant 0 : index
      %c0_85 = arith.constant 0 : index
      %c0_86 = arith.constant 0 : index
      %154 = vector.load %arg12[%c0_84, %c0_85, %c0_86] : memref<1x16x2xf32, #tpu.memory_space<vmem>>, vector<1x16x2xf32>
      tpu.vector_store %arg12[%c0_84, %c0_85, %c0_86], %153 {strides = array<i32>} : memref<1x16x2xf32, #tpu.memory_space<vmem>>, vector<1x16x2xf32>,
    } else {
    }
    return
  }
  func.func @transform_0(%arg0: i32, %arg1: i32) -> (i32, i32, i32) {
    %c0_i32 = arith.constant 0 : i32
    %c0_i32_0 = arith.constant 0 : i32
    %c0_i32_1 = arith.constant 0 : i32
    return %arg0, %c0_i32, %c0_i32_0 : i32, i32, i32
  }
  func.func @transform_1(%arg0: i32, %arg1: i32) -> (i32, i32, i32) {
    %c0_i32 = arith.constant 0 : i32
    %c0_i32_0 = arith.constant 0 : i32
    %c0_i32_1 = arith.constant 0 : i32
    return %arg0, %c0_i32, %c0_i32_0 : i32, i32, i32
  }
  func.func @transform_2(%arg0: i32, %arg1: i32) -> (i32, i32) {
    %c0_i32 = arith.constant 0 : i32
    %c0_i32_0 = arith.constant 0 : i32
    %c0_i32_1 = arith.constant 0 : i32
    return %c0_i32, %c0_i32_0 : i32, i32
  }
  func.func @transform_3(%arg0: i32, %arg1: i32) -> (i32, i32) {
    %c0_i32 = arith.constant 0 : i32
    %c0_i32_0 = arith.constant 0 : i32
    %c0_i32_1 = arith.constant 0 : i32
    return %c0_i32, %c0_i32_0 : i32, i32
  }
  func.func @transform_4(%arg0: i32, %arg1: i32) -> (i32, i32, i32, i32) {
    %c0_i32 = arith.constant 0 : i32
    %c0_i32_0 = arith.constant 0 : i32
    %c0_i32_1 = arith.constant 0 : i32
    %c0_i32_2 = arith.constant 0 : i32
    return %arg1, %c0_i32, %c0_i32_0, %c0_i32_1 : i32, i32, i32, i32
  }
  func.func @transform_5(%arg0: i32, %arg1: i32) -> (i32, i32, i32) {
    %c0_i32 = arith.constant 0 : i32
    %c0_i32_0 = arith.constant 0 : i32
    %c0_i32_1 = arith.constant 0 : i32
    return %arg1, %c0_i32, %c0_i32_0 : i32, i32, i32
  }
  func.func @transform_6(%arg0: i32, %arg1: i32) -> (i32, i32, i32, i32) {
    %c0_i32 = arith.constant 0 : i32
    %c0_i32_0 = arith.constant 0 : i32
    %c0_i32_1 = arith.constant 0 : i32
    %c0_i32_2 = arith.constant 0 : i32
    return %arg1, %c0_i32, %c0_i32_0, %c0_i32_1 : i32, i32, i32, i32
  }
  func.func @transform_7(%arg0: i32, %arg1: i32) -> (i32, i32, i32) {
    %c0_i32 = arith.constant 0 : i32
    %c0_i32_0 = arith.constant 0 : i32
    %c0_i32_1 = arith.constant 0 : i32
    return %arg1, %c0_i32, %c0_i32_0 : i32, i32, i32
  }
  func.func @transform_8(%arg0: i32, %arg1: i32) -> (i32, i32) {
    %c0_i32 = arith.constant 0 : i32
    %c0_i32_0 = arith.constant 0 : i32
    %c0_i32_1 = arith.constant 0 : i32
    return %c0_i32, %c0_i32_0 : i32, i32
  }
  func.func @transform_9(%arg0: i32, %arg1: i32) -> (i32, i32) {
    %c0_i32 = arith.constant 0 : i32
    %c0_i32_0 = arith.constant 0 : i32
    %c0_i32_1 = arith.constant 0 : i32
    return %c0_i32, %c0_i32_0 : i32, i32
  }
  func.func @transform_10(%arg0: i32, %arg1: i32) -> (i32, i32, i32) {
    %c0_i32 = arith.constant 0 : i32
    %c0_i32_0 = arith.constant 0 : i32
    %c0_i32_1 = arith.constant 0 : i32
    return %arg0, %c0_i32, %c0_i32_0 : i32, i32, i32
  }
}

</mosaic_0001>

<llo_original>
// kernel: tpu_custom_call.1
$region0: #{tpu_custom_call.1}
  #allocation0 [shape = 'u32[]', space=smem, size = 0x4, offset = 0x4, fixed_abs, tag = 'smem constant byte address 0x4 - core index']
  #allocation1 [shape = 'u32[72,128]{1,0:T(1,128)}', space=vmem, size = 0x9000, scoped, tag = 'internal scratch']
  #allocation2 [shape = 'f32[16,128]{1,0:T(8,128)}', space=vmem, size = 0x2000, scoped, tag = 'scratch operand']
  %s0 = inlined_call_operand.vmem [shape: bf16[2,16,64], index: 0, kind: input, shape index: {}]
  %s1 = inlined_call_operand.vmem [shape: f32[2,16,128], index: 1, kind: input, shape index: {}]
  %s2 = inlined_call_operand.vmem [shape: bf16[64,128], index: 2, kind: input, shape index: {}]
  %s3 = inlined_call_operand.vmem [shape: f32[1,128], index: 3, kind: input, shape index: {}]
  %s4 = inlined_call_operand.hbm [shape: bf16[4,3,128,128], index: 4, kind: input, shape index: {}]
  %s5 = inlined_call_operand.vmem [shape: f32[4,1,128], index: 5, kind: input, shape index: {}]
  %s6 = inlined_call_operand.hbm [shape: bf16[4,3,128,128], index: 6, kind: input, shape index: {}]
  %s7 = inlined_call_operand.vmem [shape: f32[4,1,128], index: 7, kind: input, shape index: {}]
  %s8 = inlined_call_operand.vmem [shape: f32[128,2], index: 8, kind: input, shape index: {}]
  %s9 = inlined_call_operand.vmem [shape: f32[1,2], index: 9, kind: input, shape index: {}]
  %s10 = inlined_call_operand.vmem [shape: f32[2,16,2], index: 10, kind: output, shape index: {}]
  %s11 = sld [smem:[#allocation0]]
  $region89: #{tpu_custom_call.1} parent=0
    _
  %s13 = ssub.s32 1, %s11
  %s14 = scalar_select 0, %s13, %s11
  $region1: #{tpu_custom_call.1} parent=0
    #allocation3 [shape = 'u8[196608]{0}', space=vmem, size = 0x30000, scoped, tag = 'input window, operand 4']
    #allocation4 [shape = 's32[2]{0}', space=sflag, size = 0x8, scoped, tag = 'scoped memory for tpu_custom_call.1']
    #allocation5 [shape = 'u8[196608]{0}', space=vmem, size = 0x30000, scoped, tag = 'input window, operand 6']
    #allocation6 [shape = 's32[2]{0}', space=sflag, size = 0x8, scoped, tag = 'scoped memory for tpu_custom_call.1']
    %15 = vsyncpa [#allocation4], 0
    %s16 = scalar_lea.sflag [#allocation4], 1
    %17 = vsyncpa %s16, 0
    %18 = vsyncpa [#allocation6], 0
    %s19 = scalar_lea.sflag [#allocation6], 1
    %20 = vsyncpa %s19, 0
    loop: start=0, step=1, limit=10
    $region2: #{tpu_custom_call.1} parent=1 // loop_pre_header
      _
    $region3: #{tpu_custom_call.1} parent=1 // loop_header
      %s22 = sphi 0, %s26
      %p23 = scmp.ge.s32.totalorder %s22, 10
      %s29 = sphi 0, %s41
      %s30 = sphi 0, %s37
      %s31 = sphi 0, %s29
      %s32 = sphi 0, %s30
      %s33 = sphi 0, %s31
      %s34 = sphi 0, %s32
      %s44 = sphi 0, %s46
      %s47 = sphi 0, %s44
      %s48 = sphi 0, %s47
      %s64 = sphi 0, %s48
      %s70 = sphi 0, %s72
      %s73 = sphi 0, %s70
      %s74 = sphi 0, %s73
      %s90 = sphi 0, %s74
      %s94 = sphi 0, %s94
      %s96 = sphi 0, %s94
      %s97 = sphi 0, %s96
      %s111 = sphi 0, %s97
      %s115 = sphi 0, %s115
      %s117 = sphi 0, %s115
      %s118 = sphi 0, %s117
      %s132 = sphi 0, %s118
      %s138 = sphi 0, %s140
      %s141 = sphi 0, %s138
      %s142 = sphi 0, %s141
      %s158 = sphi 0, %s142
      %s164 = sphi 0, %s166
      %s167 = sphi 0, %s164
      %s168 = sphi 0, %s167
      %s184 = sphi 0, %s168
      %s190 = sphi 0, %s192
      %s193 = sphi 0, %s190
      %s194 = sphi 0, %s193
      %s210 = sphi 0, %s194
      %s216 = sphi 0, %s218
      %s219 = sphi 0, %s216
      %s220 = sphi 0, %s219
      %s236 = sphi 0, %s220
      %s240 = sphi 0, %s240
      %s242 = sphi 0, %s240
      %s243 = sphi 0, %s242
      %s257 = sphi 0, %s243
      %s261 = sphi 0, %s261
      %s263 = sphi 0, %s261
      %s264 = sphi 0, %s263
      %s278 = sphi 0, %s264
      %s284 = sphi 0, %s286
      %s287 = sphi 0, %s284
      %s288 = sphi 0, %s287
      %s304 = sphi 0, %s288
    $region4: #{tpu_custom_call.1} parent=1 // loop_header_branch
      %25 = sbr.rel (%p23) target = $region8
    $region5: #{tpu_custom_call.1} parent=1 // loop_body
      %s27 = ssub.s32 %s22, 1
      %s28 = ssub.s32 %s22, 2
      %s35 = sadd.s32 1, %s30
      %p36 = scmp.ge.s32.totalorder %s35, 4
      %s37 = scalar_select %p36, 0, %s35
      %s38 = sadd.s32 1, %s29
      %s39 = scalar_select %p36, %s38, %s29
      %p40 = scmp.ge.s32.totalorder %s39, 2
      %s41 = scalar_select %p40, 0, %s39
      %s42 = ssub.s32 %s29, %s41
      %p43 = scmp.eq.s32.totalorder %s42, 0
      %s45 = sadd.s32 %s44, 1
      %s46 = scalar_select %p43, %s44, %s45
      %p49 = pneg %p43
      %p50 = scmp.eq.s32.totalorder %s22, 7
      %p51 = por %p49, %p50
      %p52 = scmp.ne.s32.totalorder %s44, %s47
      %p53 = scmp.eq.s32.totalorder %s22, 0
      %p54 = por %p52, %p53
      %p55 = scmp.ne.s32.totalorder %s44, %s47
      %p56 = scmp.eq.s32.totalorder %s27, 7
      %p57 = por %p55, %p56
      %p58 = scmp.ne.s32.totalorder %s47, %s48
      %p59 = scmp.eq.s32.totalorder %s27, 0
      %p60 = por %p58, %p59
      %p61 = scmp.ne.s32.totalorder %s47, %s48
      %p62 = scmp.eq.s32.totalorder %s28, 7
      %p63 = por %p61, %p62
      %p65 = scmp.ne.s32.totalorder %s48, %s64
      %p66 = scmp.eq.s32.totalorder %s28, 0
      %p67 = por %p65, %p66
      %s68 = ssub.s32 %s29, %s41
      %p69 = scmp.eq.s32.totalorder %s68, 0
      %s71 = sadd.s32 %s70, 1
      %s72 = scalar_select %p69, %s70, %s71
      %p75 = pneg %p69
      %p76 = scmp.eq.s32.totalorder %s22, 7
      %p77 = por %p75, %p76
      %p78 = scmp.ne.s32.totalorder %s70, %s73
      %p79 = scmp.eq.s32.totalorder %s22, 0
      %p80 = por %p78, %p79
      %p81 = scmp.ne.s32.totalorder %s70, %s73
      %p82 = scmp.eq.s32.totalorder %s27, 7
      %p83 = por %p81, %p82
      %p84 = scmp.ne.s32.totalorder %s73, %s74
      %p85 = scmp.eq.s32.totalorder %s27, 0
      %p86 = por %p84, %p85
      %p87 = scmp.ne.s32.totalorder %s73, %s74
      %p88 = scmp.eq.s32.totalorder %s28, 7
      %p89 = por %p87, %p88
      %p91 = scmp.ne.s32.totalorder %s74, %s90
      %p92 = scmp.eq.s32.totalorder %s28, 0
      %p93 = por %p91, %p92
      %s95 = sadd.s32 %s94, 1
      %p98 = scmp.eq.s32.totalorder %s22, 7
      %p99 = scmp.ne.s32.totalorder %s94, %s96
      %p100 = scmp.eq.s32.totalorder %s22, 0
      %p101 = por %p99, %p100
      %p102 = scmp.ne.s32.totalorder %s94, %s96
      %p103 = scmp.eq.s32.totalorder %s27, 7
      %p104 = por %p102, %p103
      %p105 = scmp.ne.s32.totalorder %s96, %s97
      %p106 = scmp.eq.s32.totalorder %s27, 0
      %p107 = por %p105, %p106
      %p108 = scmp.ne.s32.totalorder %s96, %s97
      %p109 = scmp.eq.s32.totalorder %s28, 7
      %p110 = por %p108, %p109
      %p112 = scmp.ne.s32.totalorder %s97, %s111
      %p113 = scmp.eq.s32.totalorder %s28, 0
      %p114 = por %p112, %p113
      %s116 = sadd.s32 %s115, 1
      %p119 = scmp.eq.s32.totalorder %s22, 7
      %p120 = scmp.ne.s32.totalorder %s115, %s117
      %p121 = scmp.eq.s32.totalorder %s22, 0
      %p122 = por %p120, %p121
      %p123 = scmp.ne.s32.totalorder %s115, %s117
      %p124 = scmp.eq.s32.totalorder %s27, 7
      %p125 = por %p123, %p124
      %p126 = scmp.ne.s32.totalorder %s117, %s118
      %p127 = scmp.eq.s32.totalorder %s27, 0
      %p128 = por %p126, %p127
      %p129 = scmp.ne.s32.totalorder %s117, %s118
      %p130 = scmp.eq.s32.totalorder %s28, 7
      %p131 = por %p129, %p130
      %p133 = scmp.ne.s32.totalorder %s118, %s132
      %p134 = scmp.eq.s32.totalorder %s28, 0
      %p135 = por %p133, %p134
      %s136 = ssub.s32 %s30, %s37
      %p137 = scmp.eq.s32.totalorder %s136, 0
      %s139 = sadd.s32 %s138, 1
      %s140 = scalar_select %p137, %s138, %s139
      %p143 = pneg %p137
      %p144 = scmp.eq.s32.totalorder %s22, 7
      %p145 = por %p143, %p144
      %p146 = scmp.ne.s32.totalorder %s138, %s141
      %p147 = scmp.eq.s32.totalorder %s22, 0
      %p148 = por %p146, %p147
      %p149 = scmp.ne.s32.totalorder %s138, %s141
      %p150 = scmp.eq.s32.totalorder %s27, 7
      %p151 = por %p149, %p150
      %p152 = scmp.ne.s32.totalorder %s141, %s142
      %p153 = scmp.eq.s32.totalorder %s27, 0
      %p154 = por %p152, %p153
      %p155 = scmp.ne.s32.totalorder %s141, %s142
      %p156 = scmp.eq.s32.totalorder %s28, 7
      %p157 = por %p155, %p156
      %p159 = scmp.ne.s32.totalorder %s142, %s158
      %p160 = scmp.eq.s32.totalorder %s28, 0
      %p161 = por %p159, %p160
      %s162 = ssub.s32 %s30, %s37
      %p163 = scmp.eq.s32.totalorder %s162, 0
      %s165 = sadd.s32 %s164, 1
      %s166 = scalar_select %p163, %s164, %s165
      %p169 = pneg %p163
      %p170 = scmp.eq.s32.totalorder %s22, 7
      %p171 = por %p169, %p170
      %p172 = scmp.ne.s32.totalorder %s164, %s167
      %p173 = scmp.eq.s32.totalorder %s22, 0
      %p174 = por %p172, %p173
      %p175 = scmp.ne.s32.totalorder %s164, %s167
      %p176 = scmp.eq.s32.totalorder %s27, 7
      %p177 = por %p175, %p176
      %p178 = scmp.ne.s32.totalorder %s167, %s168
      %p179 = scmp.eq.s32.totalorder %s27, 0
      %p180 = por %p178, %p179
      %p181 = scmp.ne.s32.totalorder %s167, %s168
      %p182 = scmp.eq.s32.totalorder %s28, 7
      %p183 = por %p181, %p182
      %p185 = scmp.ne.s32.totalorder %s168, %s184
      %p186 = scmp.eq.s32.totalorder %s28, 0
      %p187 = por %p185, %p186
      %s188 = ssub.s32 %s30, %s37
      %p189 = scmp.eq.s32.totalorder %s188, 0
      %s191 = sadd.s32 %s190, 1
      %s192 = scalar_select %p189, %s190, %s191
      %p195 = pneg %p189
      %p196 = scmp.eq.s32.totalorder %s22, 7
      %p197 = por %p195, %p196
      %p198 = scmp.ne.s32.totalorder %s190, %s193
      %p199 = scmp.eq.s32.totalorder %s22, 0
      %p200 = por %p198, %p199
      %p201 = scmp.ne.s32.totalorder %s190, %s193
      %p202 = scmp.eq.s32.totalorder %s27, 7
      %p203 = por %p201, %p202
      %p204 = scmp.ne.s32.totalorder %s193, %s194
      %p205 = scmp.eq.s32.totalorder %s27, 0
      %p206 = por %p204, %p205
      %p207 = scmp.ne.s32.totalorder %s193, %s194
      %p208 = scmp.eq.s32.totalorder %s28, 7
      %p209 = por %p207, %p208
      %p211 = scmp.ne.s32.totalorder %s194, %s210
      %p212 = scmp.eq.s32.totalorder %s28, 0
      %p213 = por %p211, %p212
      %s214 = ssub.s32 %s30, %s37
      %p215 = scmp.eq.s32.totalorder %s214, 0
      %s217 = sadd.s32 %s216, 1
      %s218 = scalar_select %p215, %s216, %s217
      %p221 = pneg %p215
      %p222 = scmp.eq.s32.totalorder %s22, 7
      %p223 = por %p221, %p222
      %p224 = scmp.ne.s32.totalorder %s216, %s219
      %p225 = scmp.eq.s32.totalorder %s22, 0
      %p226 = por %p224, %p225
      %p227 = scmp.ne.s32.totalorder %s216, %s219
      %p228 = scmp.eq.s32.totalorder %s27, 7
      %p229 = por %p227, %p228
      %p230 = scmp.ne.s32.totalorder %s219, %s220
      %p231 = scmp.eq.s32.totalorder %s27, 0
      %p232 = por %p230, %p231
      %p233 = scmp.ne.s32.totalorder %s219, %s220
      %p234 = scmp.eq.s32.totalorder %s28, 7
      %p235 = por %p233, %p234
      %p237 = scmp.ne.s32.totalorder %s220, %s236
      %p238 = scmp.eq.s32.totalorder %s28, 0
      %p239 = por %p237, %p238
      %s241 = sadd.s32 %s240, 1
      %p244 = scmp.eq.s32.totalorder %s22, 7
      %p245 = scmp.ne.s32.totalorder %s240, %s242
      %p246 = scmp.eq.s32.totalorder %s22, 0
      %p247 = por %p245, %p246
      %p248 = scmp.ne.s32.totalorder %s240, %s242
      %p249 = scmp.eq.s32.totalorder %s27, 7
      %p250 = por %p248, %p249
      %p251 = scmp.ne.s32.totalorder %s242, %s243
      %p252 = scmp.eq.s32.totalorder %s27, 0
      %p253 = por %p251, %p252
      %p254 = scmp.ne.s32.totalorder %s242, %s243
      %p255 = scmp.eq.s32.totalorder %s28, 7
      %p256 = por %p254, %p255
      %p258 = scmp.ne.s32.totalorder %s243, %s257
      %p259 = scmp.eq.s32.totalorder %s28, 0
      %p260 = por %p258, %p259
      %s262 = sadd.s32 %s261, 1
      %p265 = scmp.eq.s32.totalorder %s22, 7
      %p266 = scmp.ne.s32.totalorder %s261, %s263
      %p267 = scmp.eq.s32.totalorder %s22, 0
      %p268 = por %p266, %p267
      %p269 = scmp.ne.s32.totalorder %s261, %s263
      %p270 = scmp.eq.s32.totalorder %s27, 7
      %p271 = por %p269, %p270
      %p272 = scmp.ne.s32.totalorder %s263, %s264
      %p273 = scmp.eq.s32.totalorder %s27, 0
      %p274 = por %p272, %p273
      %p275 = scmp.ne.s32.totalorder %s263, %s264
      %p276 = scmp.eq.s32.totalorder %s28, 7
      %p277 = por %p275, %p276
      %p279 = scmp.ne.s32.totalorder %s264, %s278
      %p280 = scmp.eq.s32.totalorder %s28, 0
      %p281 = por %p279, %p280
      %s282 = ssub.s32 %s29, %s41
      %p283 = scmp.eq.s32.totalorder %s282, 0
      %s285 = sadd.s32 %s284, 1
      %s286 = scalar_select %p283, %s284, %s285
      %p289 = pneg %p283
      %p290 = scmp.eq.s32.totalorder %s22, 7
      %p291 = por %p289, %p290
      %p292 = scmp.ne.s32.totalorder %s284, %s287
      %p293 = scmp.eq.s32.totalorder %s22, 0
      %p294 = por %p292, %p293
      %p295 = scmp.ne.s32.totalorder %s284, %s287
      %p296 = scmp.eq.s32.totalorder %s27, 7
      %p297 = por %p295, %p296
      %p298 = scmp.ne.s32.totalorder %s287, %s288
      %p299 = scmp.eq.s32.totalorder %s27, 0
      %p300 = por %p298, %p299
      %p301 = scmp.ne.s32.totalorder %s287, %s288
      %p302 = scmp.eq.s32.totalorder %s28, 7
      %p303 = por %p301, %p302
      %p305 = scmp.ne.s32.totalorder %s288, %s304
      %p306 = scmp.eq.s32.totalorder %s28, 0
      %p307 = por %p305, %p306
      %p308 = scmp.le.s32.totalorder 1, %s22
      %p309 = scmp.lt.s32.totalorder %s22, 9
      %p310 = pnand %p308, %p309
      %p311 = pneg %p310
      // Predicated region
      $region9: #{tpu_custom_call.1} parent=5 // pred_check
        _
      $region10: #{tpu_custom_call.1} parent=5 // pred_check_branch
        %313 = sbr.rel (%p310) target = $region12
      $region11: #{tpu_custom_call.1} parent=5 // pred_region
        %s314 = ssub.s32 %s22, 1
        // Predicated region
        $region13: #{tpu_custom_call.1} parent=11 // pred_check
          %p315 = pneg %p107
        $region14: #{tpu_custom_call.1} parent=11 // pred_check_branch
          %317 = sbr.rel (%p315) target = $region16
        $region15: #{tpu_custom_call.1} parent=11 // pred_region
          _
        $region16: #{tpu_custom_call.1} parent=11 // pred_fallthru
          _
        // Predicated region
        $region17: #{tpu_custom_call.1} parent=11 // pred_check
          %p318 = pneg %p128
        $region18: #{tpu_custom_call.1} parent=11 // pred_check_branch
          %320 = sbr.rel (%p318) target = $region20
        $region19: #{tpu_custom_call.1} parent=11 // pred_region
          _
        $region20: #{tpu_custom_call.1} parent=11 // pred_fallthru
          _
        // Predicated region
        $region21: #{tpu_custom_call.1} parent=11 // pred_check
          %p321 = pneg %p253
        $region22: #{tpu_custom_call.1} parent=11 // pred_check_branch
          %323 = sbr.rel (%p321) target = $region24
        $region23: #{tpu_custom_call.1} parent=11 // pred_region
          _
        $region24: #{tpu_custom_call.1} parent=11 // pred_fallthru
          _
        // Predicated region
        $region25: #{tpu_custom_call.1} parent=11 // pred_check
          %p324 = pneg %p274
        $region26: #{tpu_custom_call.1} parent=11 // pred_check_branch
          %326 = sbr.rel (%p324) target = $region28
        $region27: #{tpu_custom_call.1} parent=11 // pred_region
          _
        $region28: #{tpu_custom_call.1} parent=11 // pred_fallthru
          _
      $region12: #{tpu_custom_call.1} parent=5 // pred_fallthru
        _
      %p327 = scmp.lt.s32.totalorder %s22, 8
      // Predicated region
      $region29: #{tpu_custom_call.1} parent=5 // pred_check
        %p328 = pneg %p327
      $region30: #{tpu_custom_call.1} parent=5 // pred_check_branch
        %330 = sbr.rel (%p328) target = $region32
      $region31: #{tpu_custom_call.1} parent=5 // pred_region
        // Predicated region
        $region33: #{tpu_custom_call.1} parent=31 // pred_check
          %p331 = pneg %p54
        $region34: #{tpu_custom_call.1} parent=31 // pred_check_branch
          %333 = sbr.rel (%p331) target = $region36
        $region35: #{tpu_custom_call.1} parent=31 // pred_region
          %p334 = scmp.lt.s32.totalorder %s29, 1
          %s335 = scalar_select %p334, %s29, 1
          %s336 = smul.addr %s335, 2
          %s337 = smul.addr %s336, 4
          %s338 = scalar_lea.vmem %s0, %s337
        $region36: #{tpu_custom_call.1} parent=31 // pred_fallthru
          _
        // Predicated region
        $region37: #{tpu_custom_call.1} parent=31 // pred_check
          %p339 = pneg %p80
        $region38: #{tpu_custom_call.1} parent=31 // pred_check_branch
          %341 = sbr.rel (%p339) target = $region40
        $region39: #{tpu_custom_call.1} parent=31 // pred_region
          %p342 = scmp.lt.s32.totalorder %s29, 1
          %s343 = scalar_select %p342, %s29, 1
          %s344 = smul.addr %s343, 2
          %s345 = smul.addr %s344, 8
          %s346 = scalar_lea.vmem %s1, %s345
        $region40: #{tpu_custom_call.1} parent=31 // pred_fallthru
          _
        // Predicated region
        $region41: #{tpu_custom_call.1} parent=31 // pred_check
          %p347 = pneg %p148
        $region42: #{tpu_custom_call.1} parent=31 // pred_check_branch
          %349 = sbr.rel (%p347) target = $region44
        $region43: #{tpu_custom_call.1} parent=31 // pred_region
          %s350 = sand.u32 %s138, 1
          %s351 = scalar_lea.sflag [#allocation4], %s350
          %s352 = sand.u32 %s138, 1
          %s353 = smul.addr %s352, 192
          %s354 = scalar_lea.vmem [#allocation3], %s353
          %356 = vsyncadd %s351, 0
          %s357 = smul.addr %s30, 48
          %s358 = smul.addr %s357, 4
          %s359 = scalar_lea.hbm %s4, %s358
          %s360 = sshll.u32 %s359, 4
          %s361 = int_to_ptr.hbm [resolvable:$true] %s360
          %s362 = sshll.u32 %s354, 4
          %s363 = int_to_ptr.vmem [resolvable:$true] %s362
          %368 = dma.hbm_to_vmem [thread:$0]  %s361, 3072, %s363, %s351, 64, 64, 4
        $region44: #{tpu_custom_call.1} parent=31 // pred_fallthru
          _
        // Predicated region
        $region45: #{tpu_custom_call.1} parent=31 // pred_check
          %p369 = pneg %p174
        $region46: #{tpu_custom_call.1} parent=31 // pred_check_branch
          %371 = sbr.rel (%p369) target = $region48
        $region47: #{tpu_custom_call.1} parent=31 // pred_region
          %p372 = scmp.lt.s32.totalorder %s30, 3
          %s373 = scalar_select %p372, %s30, 3
          %s374 = scalar_lea.vmem %s5, %s373
        $region48: #{tpu_custom_call.1} parent=31 // pred_fallthru
          _
        // Predicated region
        $region49: #{tpu_custom_call.1} parent=31 // pred_check
          %p375 = pneg %p200
        $region50: #{tpu_custom_call.1} parent=31 // pred_check_branch
          %377 = sbr.rel (%p375) target = $region52
        $region51: #{tpu_custom_call.1} parent=31 // pred_region
          %s378 = sand.u32 %s190, 1
          %s379 = scalar_lea.sflag [#allocation6], %s378
          %s380 = sand.u32 %s190, 1
          %s381 = smul.addr %s380, 192
          %s382 = scalar_lea.vmem [#allocation5], %s381
          %384 = vsyncadd %s379, 0
          %s385 = smul.addr %s30, 48
          %s386 = smul.addr %s385, 4
          %s387 = scalar_lea.hbm %s6, %s386
          %s388 = sshll.u32 %s387, 4
          %s389 = int_to_ptr.hbm [resolvable:$true] %s388
          %s390 = sshll.u32 %s382, 4
          %s391 = int_to_ptr.vmem [resolvable:$true] %s390
          %396 = dma.hbm_to_vmem [thread:$0]  %s389, 3072, %s391, %s379, 64, 64, 4
        $region52: #{tpu_custom_call.1} parent=31 // pred_fallthru
          _
        // Predicated region
        $region53: #{tpu_custom_call.1} parent=31 // pred_check
          %p397 = pneg %p226
        $region54: #{tpu_custom_call.1} parent=31 // pred_check_branch
          %399 = sbr.rel (%p397) target = $region56
        $region55: #{tpu_custom_call.1} parent=31 // pred_region
          %p400 = scmp.lt.s32.totalorder %s30, 3
          %s401 = scalar_select %p400, %s30, 3
          %s402 = scalar_lea.vmem %s7, %s401
        $region56: #{tpu_custom_call.1} parent=31 // pred_fallthru
          _
      $region32: #{tpu_custom_call.1} parent=5 // pred_fallthru
        _
      %p403 = scmp.le.s32.totalorder 1, %s22
      %p404 = scmp.lt.s32.totalorder %s22, 9
      %p405 = pnand %p403, %p404
      %p406 = pneg %p405
      // Predicated region
      $region57: #{tpu_custom_call.1} parent=5 // pred_check
        _
      $region58: #{tpu_custom_call.1} parent=5 // pred_check_branch
        %408 = sbr.rel (%p405) target = $region60
      $region59: #{tpu_custom_call.1} parent=5 // pred_region
        %s409 = ssub.s32 %s22, 1
        %s410 = sand.u32 %s141, 1
        %s411 = scalar_lea.sflag [#allocation4], %s410
        %s412 = sand.u32 %s141, 1
        %s413 = smul.addr %s412, 192
        %s414 = scalar_lea.vmem [#allocation3], %s413
        // Predicated region
        $region61: #{tpu_custom_call.1} parent=59 // pred_check
          %p415 = pneg %p154
        $region62: #{tpu_custom_call.1} parent=59 // pred_check_branch
          %417 = sbr.rel (%p415) target = $region64
        $region63: #{tpu_custom_call.1} parent=59 // pred_region
          %419 = dma.done %s411, 3072
        $region64: #{tpu_custom_call.1} parent=59 // pred_fallthru
          _
        %s420 = sand.u32 %s193, 1
        %s421 = scalar_lea.sflag [#allocation6], %s420
        %s422 = sand.u32 %s193, 1
        %s423 = smul.addr %s422, 192
        %s424 = scalar_lea.vmem [#allocation5], %s423
        // Predicated region
        $region65: #{tpu_custom_call.1} parent=59 // pred_check
          %p425 = pneg %p206
        $region66: #{tpu_custom_call.1} parent=59 // pred_check_branch
          %427 = sbr.rel (%p425) target = $region68
        $region67: #{tpu_custom_call.1} parent=59 // pred_region
          %429 = dma.done %s421, 3072
        $region68: #{tpu_custom_call.1} parent=59 // pred_fallthru
          _
        %p430 = scmp.lt.s32.totalorder %s31, 1
        %s431 = scalar_select %p430, %s31, 1
        %s432 = smul.addr %s431, 2
        %s433 = smul.addr %s432, 4
        %s434 = scalar_lea.vmem %s0, %s433
        %p435 = pneg %p60
        %p436 = pneg %p57
        %p437 = scmp.lt.s32.totalorder %s31, 1
        %s438 = scalar_select %p437, %s31, 1
        %s439 = smul.addr %s438, 2
        %s440 = smul.addr %s439, 8
        %s441 = scalar_lea.vmem %s1, %s440
        %p442 = pneg %p86
        %p443 = pneg %p83
        %p444 = pneg %p107
        %p445 = pneg %p104
        %p446 = pneg %p128
        %p447 = pneg %p125
        %s448 = sand.u32 %s141, 1
        %s449 = scalar_lea.sflag [#allocation4], %s448
        %s450 = sand.u32 %s141, 1
        %s451 = smul.addr %s450, 192
        %s452 = scalar_lea.vmem [#allocation3], %s451
        %p453 = pneg %p154
        %p454 = pneg %p151
        %p455 = scmp.lt.s32.totalorder %s32, 3
        %s456 = scalar_select %p455, %s32, 3
        %s457 = scalar_lea.vmem %s5, %s456
        %p458 = pneg %p180
        %p459 = pneg %p177
        %s460 = sand.u32 %s193, 1
        %s461 = scalar_lea.sflag [#allocation6], %s460
        %s462 = sand.u32 %s193, 1
        %s463 = smul.addr %s462, 192
        %s464 = scalar_lea.vmem [#allocation5], %s463
        %p465 = pneg %p206
        %p466 = pneg %p203
        %p467 = scmp.lt.s32.totalorder %s32, 3
        %s468 = scalar_select %p467, %s32, 3
        %s469 = scalar_lea.vmem %s7, %s468
        %p470 = pneg %p232
        %p471 = pneg %p229
        %p472 = pneg %p253
        %p473 = pneg %p250
        %p474 = pneg %p274
        %p475 = pneg %p271
        %p476 = pneg %p300
        %p477 = pneg %p297
        %p478 = scmp.lt.s32.totalorder %s31, 1
        %s479 = scalar_select %p478, %s31, 1
        %s480 = smul.addr %s479, 2
        %s481 = smul.addr %s480, 8
        %s482 = scalar_lea.vmem %s10, %s481
        %p483 = scmp.lt.s32.totalorder %s31, 1
        %s484 = scalar_select %p483, %s31, 1
        %s485 = smul.addr %s484, 2
        %s486 = smul.addr %s485, 4
        %s487 = scalar_lea.vmem %s0, %s486
        %p488 = scmp.lt.s32.totalorder %s31, 1
        %s489 = scalar_select %p488, %s31, 1
        %s490 = smul.addr %s489, 2
        %s491 = smul.addr %s490, 8
        %s492 = scalar_lea.vmem %s1, %s491
        %p493 = scmp.lt.s32.totalorder %s32, 3
        %s494 = scalar_select %p493, %s32, 3
        %s495 = scalar_lea.vmem %s5, %s494
        %p496 = scmp.lt.s32.totalorder %s32, 3
        %s497 = scalar_select %p496, %s32, 3
        %s498 = scalar_lea.vmem %s7, %s497
        %p499 = scmp.lt.s32.totalorder %s31, 1
        %s500 = scalar_select %p499, %s31, 1
        %s501 = smul.addr %s500, 2
        %s502 = smul.addr %s501, 8
        %s503 = scalar_lea.vmem %s10, %s502
        %v505 = vlaneseq
        %v506 = vshrl.u32 %v505, 7
        %v507 = vadd.s32 %v506, 8
        %vm508 = vcmp.lt.s32.totalorder %v506, 0
        %v509 = vsub.s32 0, %v506
        %v510 = vsel %vm508, %v509, %v506
        %v511 = vshrl.u32 %v510, 4
        %v512 = vand.u32 %v510, 15
        %v513 = vsub.s32 0, %v512
        %v514 = vsel %vm508, %v513, %v512
        %vm515 = vcmp.lt.s32.totalorder %v507, 0
        %v516 = vsub.s32 0, %v507
        %v517 = vsel %vm515, %v516, %v507
        %v518 = vshrl.u32 %v517, 4
        %v519 = vand.u32 %v517, 15
        %v520 = vsub.s32 0, %v519
        %v521 = vsel %vm515, %v520, %v519
        %vm522 = vcmp.ne.s32.totalorder %v514, 0
        %vm523 = vcmp.ne.s32.totalorder %v521, 0
        %vm524 = vcmp.lt.s32.totalorder %v514, 0
        %vm525 = vcmp.lt.s32.totalorder %v521, 0
        %vm526 = vmand %vm524, %vm522
        %vm527 = vmand %vm525, %vm523
        %v528 = vadd.s32 %v514, 16
        %v529 = vadd.s32 %v521, 16
        %v530 = vsel %vm526, %v528, %v514
        %v531 = vsel %vm527, %v529, %v521
        %vm532 = vcmp.ne.s32.totalorder %v530, 0
        %vm533 = vcmp.ne.s32.totalorder %v531, 0
        %vm534 = vcmp.ne.s32.totalorder %v530, 15
        %vm535 = vcmp.ne.s32.totalorder %v531, 15
        %p536 = scmp.eq.s32.totalorder %s32, 0
        // Predicated region
        $region69: #{tpu_custom_call.1} parent=59 // pred_check
          %p537 = pneg %p536
        $region70: #{tpu_custom_call.1} parent=59 // pred_check_branch
          %539 = sbr.rel (%p537) target = $region72
        $region71: #{tpu_custom_call.1} parent=59 // pred_region
          %v540 = vld [vmem:[%s487] sm:$0xf]
          %v541 = vld [vmem:[%s487 + $0x4] sm:$0xf]
          %v542 = vld [vmem:[%s2] sm:$0xf]
          %v543 = vld [vmem:[%s2 + $0x4] sm:$0xf]
          %v544 = vld [vmem:[%s2 + $0x8] sm:$0xf]
          %v545 = vld [vmem:[%s2 + $0xc] sm:$0xf]
          %v546 = vld [vmem:[%s2 + $0x10] sm:$0xf]
          %v547 = vld [vmem:[%s2 + $0x14] sm:$0xf]
          %v548 = vld [vmem:[%s2 + $0x18] sm:$0xf]
          %v549 = vld [vmem:[%s2 + $0x1c] sm:$0xf]
          %v550 = vld [vmem:[%s3] sm:$0x1]
          %v552 = vperm.slane %v550, 0
          %v556 = vunpack.c.l.b16 %v540
          %v557 = vunpack.c.l.b16 %v541
          %v558 = vpack.c.b16 %v557, %v556
          %v567 = vunpack.c.l.b16 %v542
          %v568 = vunpack.c.l.b16 %v543
          %v569 = vunpack.c.l.b16 %v544
          %v570 = vunpack.c.l.b16 %v545
          %v571 = vunpack.c.l.b16 %v546
          %v572 = vunpack.c.l.b16 %v547
          %v573 = vunpack.c.l.b16 %v548
          %v574 = vunpack.c.l.b16 %v549
          %v575 = vpack.c.b16 %v568, %v567
          %v576 = vpack.c.b16 %v570, %v569
          %v577 = vpack.c.b16 %v572, %v571
          %v578 = vpack.c.b16 %v574, %v573
          %vm583 = vcmask 523264
          %v585 = vsel %vm583, %v558, 0
          %587 = vmatpush.bf16.msra.mxu0 0
          %588 = vmatpush.bf16.msra.mxu0 0
          %589 = vmatpush.bf16.msra.mxu0 0
          %590 = vmatpush.bf16.msra.mxu0 0
          %591 = vmatpush.bf16.msra.mxu0 %v578
          %592 = vmatpush.bf16.msra.mxu0 %v577
          %593 = vmatpush.bf16.msra.mxu0 %v576
          %594 = vmatpush.bf16.msra.mxu0 %v575
          %595 = vmatmul.bf16.gmra.mxu0 %v585
          %v596 = vpop.f32.mrf.mxu0
          %v597 = vadd.f32 %v552, %v596
          %v598 = vpop.f32.mrf.mxu0
          %v599 = vadd.f32 %v552, %v598
          %600 = vdwg.mxu0
          %v601 = vld [vmem:[%s492] sm:$0xff]
          %v602 = vld [vmem:[%s492 + $0x8] sm:$0xff]
          %v603 = vadd.f32 %v597, %v601
          %v604 = vadd.f32 %v599, %v602
          %605 = vst [vmem:[#allocation2] sm:$0xff] %v603
          %606 = vst [vmem:[#allocation2 + $0x8] sm:$0xff] %v604
        $region72: #{tpu_custom_call.1} parent=59 // pred_fallthru
          _
        %v607 = vld [vmem:[#allocation2] sm:$0xff]
        %v608 = vld [vmem:[#allocation2 + $0x8] sm:$0xff]
        %v609 = vrot.slane %v607, 7
        %v610 = vrot.slane %v608, 7
        %vm611 = vcmp.lt.s32.totalorder %v506, 1
        %v612 = vsel %vm611, %v609, %v610
        %v613 = vsel %vm611, %v610, %v609
        %v614 = vsel %vm532, %v613, 0.0
        %v615 = vsel %vm533, %v612, 0.0
        %v616 = vrot.slane %v607, 1
        %v617 = vrot.slane %v608, 1
        %vm618 = vcmp.lt.s32.totalorder %v506, 7
        %v619 = vsel %vm618, %v616, %v617
        %v620 = vsel %vm618, %v617, %v616
        %v621 = vsel %vm534, %v619, 0.0
        %v622 = vsel %vm535, %v620, 0.0
        %v623 = vpack.c.bf16 %v615, %v614
        %v624 = vld [vmem:[%s414] sm:$0xf]
        %v625 = vld [vmem:[%s414 + $0x4] sm:$0xf]
        %v626 = vld [vmem:[%s414 + $0x8] sm:$0xf]
        %v627 = vld [vmem:[%s414 + $0xc] sm:$0xf]
        %v628 = vld [vmem:[%s414 + $0x10] sm:$0xf]
        %v629 = vld [vmem:[%s414 + $0x14] sm:$0xf]
        %v630 = vld [vmem:[%s414 + $0x18] sm:$0xf]
        %v631 = vld [vmem:[%s414 + $0x1c] sm:$0xf]
        %v632 = vld [vmem:[%s414 + $0x20] sm:$0xf]
        %v633 = vld [vmem:[%s414 + $0x24] sm:$0xf]
        %v634 = vld [vmem:[%s414 + $0x28] sm:$0xf]
        %v635 = vld [vmem:[%s414 + $0x2c] sm:$0xf]
        %v636 = vld [vmem:[%s414 + $0x30] sm:$0xf]
        %v637 = vld [vmem:[%s414 + $0x34] sm:$0xf]
        %v638 = vld [vmem:[%s414 + $0x38] sm:$0xf]
        %v639 = vld [vmem:[%s414 + $0x3c] sm:$0xf]
        %v640 = vpack.c.bf16 %v608, %v607
        %s641 = scalar_lea.vmem %s414, 64 [#allocation3]
        %v642 = vld [vmem:[%s641] sm:$0xf]
        %v643 = vld [vmem:[%s641 + $0x4] sm:$0xf]
        %v644 = vld [vmem:[%s641 + $0x8] sm:$0xf]
        %v645 = vld [vmem:[%s641 + $0xc] sm:$0xf]
        %v646 = vld [vmem:[%s641 + $0x10] sm:$0xf]
        %v647 = vld [vmem:[%s641 + $0x14] sm:$0xf]
        %v648 = vld [vmem:[%s641 + $0x18] sm:$0xf]
        %v649 = vld [vmem:[%s641 + $0x1c] sm:$0xf]
        %v650 = vld [vmem:[%s641 + $0x20] sm:$0xf]
        %v651 = vld [vmem:[%s641 + $0x24] sm:$0xf]
        %v652 = vld [vmem:[%s641 + $0x28] sm:$0xf]
        %v653 = vld [vmem:[%s641 + $0x2c] sm:$0xf]
        %v654 = vld [vmem:[%s641 + $0x30] sm:$0xf]
        %v655 = vld [vmem:[%s641 + $0x34] sm:$0xf]
        %v656 = vld [vmem:[%s641 + $0x38] sm:$0xf]
        %v657 = vld [vmem:[%s641 + $0x3c] sm:$0xf]
        %v674 = vunpack.c.l.b16 %v642
        %v675 = vunpack.c.l.b16 %v643
        %v676 = vunpack.c.l.b16 %v644
        %v677 = vunpack.c.l.b16 %v645
        %v678 = vunpack.c.l.b16 %v646
        %v679 = vunpack.c.l.b16 %v647
        %v680 = vunpack.c.l.b16 %v648
        %v681 = vunpack.c.l.b16 %v649
        %v682 = vunpack.c.l.b16 %v650
        %v683 = vunpack.c.l.b16 %v651
        %v684 = vunpack.c.l.b16 %v652
        %v685 = vunpack.c.l.b16 %v653
        %v686 = vunpack.c.l.b16 %v654
        %v687 = vunpack.c.l.b16 %v655
        %v688 = vunpack.c.l.b16 %v656
        %v689 = vunpack.c.l.b16 %v657
        %v690 = vpack.c.b16 %v675, %v674
        %v691 = vpack.c.b16 %v677, %v676
        %v692 = vpack.c.b16 %v679, %v678
        %v693 = vpack.c.b16 %v681, %v680
        %v694 = vpack.c.b16 %v683, %v682
        %v695 = vpack.c.b16 %v685, %v684
        %v696 = vpack.c.b16 %v687, %v686
        %v697 = vpack.c.b16 %v689, %v688
        %706 = vmatpush.bf16.msra.mxu0 %v697
        %707 = vmatpush.bf16.msra.mxu0 %v696
        %708 = vmatpush.bf16.msra.mxu0 %v695
        %709 = vmatpush.bf16.msra.mxu0 %v694
        %710 = vmatpush.bf16.msra.mxu0 %v693
        %711 = vmatpush.bf16.msra.mxu0 %v692
        %712 = vmatpush.bf16.msra.mxu0 %v691
        %713 = vmatpush.bf16.msra.mxu0 %v690
        %714 = vmatmul.bf16.gmra.mxu0 %v640
        %v715 = vpop.f32.mrf.mxu0
        %v716 = vadd.f32 0.0, %v715
        %v717 = vpop.f32.mrf.mxu0
        %v718 = vadd.f32 0.0, %v717
        %719 = vdwg.mxu0
        %v736 = vunpack.c.l.b16 %v624
        %v737 = vunpack.c.l.b16 %v625
        %v738 = vunpack.c.l.b16 %v626
        %v739 = vunpack.c.l.b16 %v627
        %v740 = vunpack.c.l.b16 %v628
        %v741 = vunpack.c.l.b16 %v629
        %v742 = vunpack.c.l.b16 %v630
        %v743 = vunpack.c.l.b16 %v631
        %v744 = vunpack.c.l.b16 %v632
        %v745 = vunpack.c.l.b16 %v633
        %v746 = vunpack.c.l.b16 %v634
        %v747 = vunpack.c.l.b16 %v635
        %v748 = vunpack.c.l.b16 %v636
        %v749 = vunpack.c.l.b16 %v637
        %v750 = vunpack.c.l.b16 %v638
        %v751 = vunpack.c.l.b16 %v639
        %v752 = vpack.c.b16 %v737, %v736
        %v753 = vpack.c.b16 %v739, %v738
        %v754 = vpack.c.b16 %v741, %v740
        %v755 = vpack.c.b16 %v743, %v742
        %v756 = vpack.c.b16 %v745, %v744
        %v757 = vpack.c.b16 %v747, %v746
        %v758 = vpack.c.b16 %v749, %v748
        %v759 = vpack.c.b16 %v751, %v750
        %768 = vmatpush.bf16.msra.mxu0 %v759
        %769 = vmatpush.bf16.msra.mxu0 %v758
        %770 = vmatpush.bf16.msra.mxu0 %v757
        %771 = vmatpush.bf16.msra.mxu0 %v756
        %772 = vmatpush.bf16.msra.mxu0 %v755
        %773 = vmatpush.bf16.msra.mxu0 %v754
        %774 = vmatpush.bf16.msra.mxu0 %v753
        %775 = vmatpush.bf16.msra.mxu0 %v752
        %776 = vmatmul.bf16.gmra.mxu0 %v623
        %v777 = vpop.f32.mrf.mxu0
        %v778 = vadd.f32 %v716, %v777
        %v779 = vpop.f32.mrf.mxu0
        %v780 = vadd.f32 %v718, %v779
        %781 = vdwg.mxu0
        %v782 = vpack.c.bf16 %v622, %v621
        %s783 = scalar_lea.vmem %s414, 128 [#allocation3]
        %v784 = vld [vmem:[%s783] sm:$0xf]
        %v785 = vld [vmem:[%s783 + $0x4] sm:$0xf]
        %v786 = vld [vmem:[%s783 + $0x8] sm:$0xf]
        %v787 = vld [vmem:[%s783 + $0xc] sm:$0xf]
        %v788 = vld [vmem:[%s783 + $0x10] sm:$0xf]
        %v789 = vld [vmem:[%s783 + $0x14] sm:$0xf]
        %v790 = vld [vmem:[%s783 + $0x18] sm:$0xf]
        %v791 = vld [vmem:[%s783 + $0x1c] sm:$0xf]
        %v792 = vld [vmem:[%s783 + $0x20] sm:$0xf]
        %v793 = vld [vmem:[%s783 + $0x24] sm:$0xf]
        %v794 = vld [vmem:[%s783 + $0x28] sm:$0xf]
        %v795 = vld [vmem:[%s783 + $0x2c] sm:$0xf]
        %v796 = vld [vmem:[%s783 + $0x30] sm:$0xf]
        %v797 = vld [vmem:[%s783 + $0x34] sm:$0xf]
        %v798 = vld [vmem:[%s783 + $0x38] sm:$0xf]
        %v799 = vld [vmem:[%s783 + $0x3c] sm:$0xf]
        %v816 = vunpack.c.l.b16 %v784
        %v817 = vunpack.c.l.b16 %v785
        %v818 = vunpack.c.l.b16 %v786
        %v819 = vunpack.c.l.b16 %v787
        %v820 = vunpack.c.l.b16 %v788
        %v821 = vunpack.c.l.b16 %v789
        %v822 = vunpack.c.l.b16 %v790
        %v823 = vunpack.c.l.b16 %v791
        %v824 = vunpack.c.l.b16 %v792
        %v825 = vunpack.c.l.b16 %v793
        %v826 = vunpack.c.l.b16 %v794
        %v827 = vunpack.c.l.b16 %v795
        %v828 = vunpack.c.l.b16 %v796
        %v829 = vunpack.c.l.b16 %v797
        %v830 = vunpack.c.l.b16 %v798
        %v831 = vunpack.c.l.b16 %v799
        %v832 = vpack.c.b16 %v817, %v816
        %v833 = vpack.c.b16 %v819, %v818
        %v834 = vpack.c.b16 %v821, %v820
        %v835 = vpack.c.b16 %v823, %v822
        %v836 = vpack.c.b16 %v825, %v824
        %v837 = vpack.c.b16 %v827, %v826
        %v838 = vpack.c.b16 %v829, %v828
        %v839 = vpack.c.b16 %v831, %v830
        %848 = vmatpush.bf16.msra.mxu0 %v839
        %849 = vmatpush.bf16.msra.mxu0 %v838
        %850 = vmatpush.bf16.msra.mxu0 %v837
        %851 = vmatpush.bf16.msra.mxu0 %v836
        %852 = vmatpush.bf16.msra.mxu0 %v835
        %853 = vmatpush.bf16.msra.mxu0 %v834
        %854 = vmatpush.bf16.msra.mxu0 %v833
        %855 = vmatpush.bf16.msra.mxu0 %v832
        %856 = vmatmul.bf16.gmra.mxu0 %v782
        %v857 = vpop.f32.mrf.mxu0
        %v858 = vadd.f32 0.0, %v857
        %v859 = vpop.f32.mrf.mxu0
        %v860 = vadd.f32 0.0, %v859
        %861 = vdwg.mxu0
        %v862 = vadd.f32 %v778, %v858
        %v863 = vadd.f32 %v780, %v860
        %v864 = vld [vmem:[%s495] sm:$0x1]
        %v866 = vperm.slane %v864, 0
        %v868 = vadd.f32 %v862, %v866
        %v869 = vadd.f32 %v863, %v866
        %v870 = vmul.f32 %v868, 0.5
        %v871 = vmul.f32 %v869, 0.5
        %v872 = vmul.f32 %v868, 0.70710677
        %v873 = vmul.f32 %v869, 0.70710677
        %v874 = vand.u32 2147483647, %v872
        %v875 = vand.u32 2147483647, %v873
        %v876 = vmul.f32 %v874, 0.3275911
        %v877 = vmul.f32 %v875, 0.3275911
        %v878 = vadd.f32 %v876, 1.0
        %v879 = vadd.f32 %v877, 1.0
        %v880 = vrcp.pop %v878
        %v881 = vrcp.pop %v879
        %v882 = vmul.f32 %v880, 1.0614054
        %v883 = vmul.f32 %v881, 1.0614054
        %v884 = vadd.f32 %v882, -1.4531521
        %v885 = vadd.f32 %v883, -1.4531521
        %v886 = vmul.f32 %v880, %v884
        %v887 = vmul.f32 %v881, %v885
        %v888 = vadd.f32 %v886, 1.4214138
        %v889 = vadd.f32 %v887, 1.4214138
        %v890 = vmul.f32 %v880, %v888
        %v891 = vmul.f32 %v881, %v889
        %v892 = vadd.f32 %v890, -0.28449672
        %v893 = vadd.f32 %v891, -0.28449672
        %v894 = vmul.f32 %v880, %v892
        %v895 = vmul.f32 %v881, %v893
        %v896 = vadd.f32 %v894, 0.2548296
        %v897 = vadd.f32 %v895, 0.2548296
        %v898 = vmul.f32 %v880, %v896
        %v899 = vmul.f32 %v881, %v897
        %v900 = vsub.f32 0.0, %v874
        %v901 = vsub.f32 0.0, %v875
        %v902 = vmul.f32 %v900, %v874
        %v903 = vmul.f32 %v901, %v875
        %v904 = vmul.f32 %v902, 1.442695
        %v905 = vpow.pop %v904
        %v906 = vmul.f32 %v903, 1.442695
        %v907 = vpow.pop %v906
        %v908 = vmul.f32 %v898, %v905
        %v909 = vmul.f32 %v899, %v907
        %v910 = vsub.f32 1.0, %v908
        %v911 = vsub.f32 1.0, %v909
        %vm912 = vcmp.ge.f32.partialorder %v872, 0.0
        %vm913 = vcmp.ge.f32.partialorder %v873, 0.0
        %v914 = vsub.f32 0.0, %v910
        %v915 = vsub.f32 0.0, %v911
        %v916 = vsel %vm912, %v910, %v914
        %v917 = vsel %vm913, %v911, %v915
        %v918 = vadd.f32 %v916, 1.0
        %v919 = vadd.f32 %v917, 1.0
        %v920 = vmul.f32 %v870, %v918
        %v921 = vmul.f32 %v871, %v919
        %v922 = vrot.slane %v920, 7
        %v923 = vrot.slane %v921, 7
        %v924 = vsel %vm611, %v922, %v923
        %v925 = vsel %vm611, %v923, %v922
        %v926 = vsel %vm532, %v925, 0.0
        %v927 = vsel %vm533, %v924, 0.0
        %v928 = vrot.slane %v920, 1
        %v929 = vrot.slane %v921, 1
        %v930 = vsel %vm618, %v928, %v929
        %v931 = vsel %vm618, %v929, %v928
        %v932 = vsel %vm534, %v930, 0.0
        %v933 = vsel %vm535, %v931, 0.0
        %v934 = vpack.c.bf16 %v927, %v926
        %v935 = vld [vmem:[%s424] sm:$0xf]
        %v936 = vld [vmem:[%s424 + $0x4] sm:$0xf]
        %v937 = vld [vmem:[%s424 + $0x8] sm:$0xf]
        %v938 = vld [vmem:[%s424 + $0xc] sm:$0xf]
        %v939 = vld [vmem:[%s424 + $0x10] sm:$0xf]
        %v940 = vld [vmem:[%s424 + $0x14] sm:$0xf]
        %v941 = vld [vmem:[%s424 + $0x18] sm:$0xf]
        %v942 = vld [vmem:[%s424 + $0x1c] sm:$0xf]
        %v943 = vld [vmem:[%s424 + $0x20] sm:$0xf]
        %v944 = vld [vmem:[%s424 + $0x24] sm:$0xf]
        %v945 = vld [vmem:[%s424 + $0x28] sm:$0xf]
        %v946 = vld [vmem:[%s424 + $0x2c] sm:$0xf]
        %v947 = vld [vmem:[%s424 + $0x30] sm:$0xf]
        %v948 = vld [vmem:[%s424 + $0x34] sm:$0xf]
        %v949 = vld [vmem:[%s424 + $0x38] sm:$0xf]
        %v950 = vld [vmem:[%s424 + $0x3c] sm:$0xf]
        %v951 = vpack.c.bf16 %v921, %v920
        %s952 = scalar_lea.vmem %s424, 64 [#allocation5]
        %v953 = vld [vmem:[%s952] sm:$0xf]
        %v954 = vld [vmem:[%s952 + $0x4] sm:$0xf]
        %v955 = vld [vmem:[%s952 + $0x8] sm:$0xf]
        %v956 = vld [vmem:[%s952 + $0xc] sm:$0xf]
        %v957 = vld [vmem:[%s952 + $0x10] sm:$0xf]
        %v958 = vld [vmem:[%s952 + $0x14] sm:$0xf]
        %v959 = vld [vmem:[%s952 + $0x18] sm:$0xf]
        %v960 = vld [vmem:[%s952 + $0x1c] sm:$0xf]
        %v961 = vld [vmem:[%s952 + $0x20] sm:$0xf]
        %v962 = vld [vmem:[%s952 + $0x24] sm:$0xf]
        %v963 = vld [vmem:[%s952 + $0x28] sm:$0xf]
        %v964 = vld [vmem:[%s952 + $0x2c] sm:$0xf]
        %v965 = vld [vmem:[%s952 + $0x30] sm:$0xf]
        %v966 = vld [vmem:[%s952 + $0x34] sm:$0xf]
        %v967 = vld [vmem:[%s952 + $0x38] sm:$0xf]
        %v968 = vld [vmem:[%s952 + $0x3c] sm:$0xf]
        %v985 = vunpack.c.l.b16 %v953
        %v986 = vunpack.c.l.b16 %v954
        %v987 = vunpack.c.l.b16 %v955
        %v988 = vunpack.c.l.b16 %v956
        %v989 = vunpack.c.l.b16 %v957
        %v990 = vunpack.c.l.b16 %v958
        %v991 = vunpack.c.l.b16 %v959
        %v992 = vunpack.c.l.b16 %v960
        %v993 = vunpack.c.l.b16 %v961
        %v994 = vunpack.c.l.b16 %v962
        %v995 = vunpack.c.l.b16 %v963
        %v996 = vunpack.c.l.b16 %v964
        %v997 = vunpack.c.l.b16 %v965
        %v998 = vunpack.c.l.b16 %v966
        %v999 = vunpack.c.l.b16 %v967
        %v1000 = vunpack.c.l.b16 %v968
        %v1001 = vpack.c.b16 %v986, %v985
        %v1002 = vpack.c.b16 %v988, %v987
        %v1003 = vpack.c.b16 %v990, %v989
        %v1004 = vpack.c.b16 %v992, %v991
        %v1005 = vpack.c.b16 %v994, %v993
        %v1006 = vpack.c.b16 %v996, %v995
        %v1007 = vpack.c.b16 %v998, %v997
        %v1008 = vpack.c.b16 %v1000, %v999
        %1017 = vmatpush.bf16.msra.mxu0 %v1008
        %1018 = vmatpush.bf16.msra.mxu0 %v1007
        %1019 = vmatpush.bf16.msra.mxu0 %v1006
        %1020 = vmatpush.bf16.msra.mxu0 %v1005
        %1021 = vmatpush.bf16.msra.mxu0 %v1004
        %1022 = vmatpush.bf16.msra.mxu0 %v1003
        %1023 = vmatpush.bf16.msra.mxu0 %v1002
        %1024 = vmatpush.bf16.msra.mxu0 %v1001
        %1025 = vmatmul.bf16.gmra.mxu0 %v951
        %v1026 = vpop.f32.mrf.mxu0
        %v1027 = vadd.f32 0.0, %v1026
        %v1028 = vpop.f32.mrf.mxu0
        %v1029 = vadd.f32 0.0, %v1028
        %1030 = vdwg.mxu0
        %v1047 = vunpack.c.l.b16 %v935
        %v1048 = vunpack.c.l.b16 %v936
        %v1049 = vunpack.c.l.b16 %v937
        %v1050 = vunpack.c.l.b16 %v938
        %v1051 = vunpack.c.l.b16 %v939
        %v1052 = vunpack.c.l.b16 %v940
        %v1053 = vunpack.c.l.b16 %v941
        %v1054 = vunpack.c.l.b16 %v942
        %v1055 = vunpack.c.l.b16 %v943
        %v1056 = vunpack.c.l.b16 %v944
        %v1057 = vunpack.c.l.b16 %v945
        %v1058 = vunpack.c.l.b16 %v946
        %v1059 = vunpack.c.l.b16 %v947
        %v1060 = vunpack.c.l.b16 %v948
        %v1061 = vunpack.c.l.b16 %v949
        %v1062 = vunpack.c.l.b16 %v950
        %v1063 = vpack.c.b16 %v1048, %v1047
        %v1064 = vpack.c.b16 %v1050, %v1049
        %v1065 = vpack.c.b16 %v1052, %v1051
        %v1066 = vpack.c.b16 %v1054, %v1053
        %v1067 = vpack.c.b16 %v1056, %v1055
        %v1068 = vpack.c.b16 %v1058, %v1057
        %v1069 = vpack.c.b16 %v1060, %v1059
        %v1070 = vpack.c.b16 %v1062, %v1061
        %1079 = vmatpush.bf16.msra.mxu0 %v1070
        %1080 = vmatpush.bf16.msra.mxu0 %v1069
        %1081 = vmatpush.bf16.msra.mxu0 %v1068
        %1082 = vmatpush.bf16.msra.mxu0 %v1067
        %1083 = vmatpush.bf16.msra.mxu0 %v1066
        %1084 = vmatpush.bf16.msra.mxu0 %v1065
        %1085 = vmatpush.bf16.msra.mxu0 %v1064
        %1086 = vmatpush.bf16.msra.mxu0 %v1063
        %1087 = vmatmul.bf16.gmra.mxu0 %v934
        %v1088 = vpop.f32.mrf.mxu0
        %v1089 = vadd.f32 %v1027, %v1088
        %v1090 = vpop.f32.mrf.mxu0
        %v1091 = vadd.f32 %v1029, %v1090
        %1092 = vdwg.mxu0
        %v1093 = vpack.c.bf16 %v933, %v932
        %s1094 = scalar_lea.vmem %s424, 128 [#allocation5]
        %v1095 = vld [vmem:[%s1094] sm:$0xf]
        %v1096 = vld [vmem:[%s1094 + $0x4] sm:$0xf]
        %v1097 = vld [vmem:[%s1094 + $0x8] sm:$0xf]
        %v1098 = vld [vmem:[%s1094 + $0xc] sm:$0xf]
        %v1099 = vld [vmem:[%s1094 + $0x10] sm:$0xf]
        %v1100 = vld [vmem:[%s1094 + $0x14] sm:$0xf]
        %v1101 = vld [vmem:[%s1094 + $0x18] sm:$0xf]
        %v1102 = vld [vmem:[%s1094 + $0x1c] sm:$0xf]
        %v1103 = vld [vmem:[%s1094 + $0x20] sm:$0xf]
        %v1104 = vld [vmem:[%s1094 + $0x24] sm:$0xf]
        %v1105 = vld [vmem:[%s1094 + $0x28] sm:$0xf]
        %v1106 = vld [vmem:[%s1094 + $0x2c] sm:$0xf]
        %v1107 = vld [vmem:[%s1094 + $0x30] sm:$0xf]
        %v1108 = vld [vmem:[%s1094 + $0x34] sm:$0xf]
        %v1109 = vld [vmem:[%s1094 + $0x38] sm:$0xf]
        %v1110 = vld [vmem:[%s1094 + $0x3c] sm:$0xf]
        %v1127 = vunpack.c.l.b16 %v1095
        %v1128 = vunpack.c.l.b16 %v1096
        %v1129 = vunpack.c.l.b16 %v1097
        %v1130 = vunpack.c.l.b16 %v1098
        %v1131 = vunpack.c.l.b16 %v1099
        %v1132 = vunpack.c.l.b16 %v1100
        %v1133 = vunpack.c.l.b16 %v1101
        %v1134 = vunpack.c.l.b16 %v1102
        %v1135 = vunpack.c.l.b16 %v1103
        %v1136 = vunpack.c.l.b16 %v1104
        %v1137 = vunpack.c.l.b16 %v1105
        %v1138 = vunpack.c.l.b16 %v1106
        %v1139 = vunpack.c.l.b16 %v1107
        %v1140 = vunpack.c.l.b16 %v1108
        %v1141 = vunpack.c.l.b16 %v1109
        %v1142 = vunpack.c.l.b16 %v1110
        %v1143 = vpack.c.b16 %v1128, %v1127
        %v1144 = vpack.c.b16 %v1130, %v1129
        %v1145 = vpack.c.b16 %v1132, %v1131
        %v1146 = vpack.c.b16 %v1134, %v1133
        %v1147 = vpack.c.b16 %v1136, %v1135
        %v1148 = vpack.c.b16 %v1138, %v1137
        %v1149 = vpack.c.b16 %v1140, %v1139
        %v1150 = vpack.c.b16 %v1142, %v1141
        %1159 = vmatpush.bf16.msra.mxu0 %v1150
        %1160 = vmatpush.bf16.msra.mxu0 %v1149
        %1161 = vmatpush.bf16.msra.mxu0 %v1148
        %1162 = vmatpush.bf16.msra.mxu0 %v1147
        %1163 = vmatpush.bf16.msra.mxu0 %v1146
        %1164 = vmatpush.bf16.msra.mxu0 %v1145
        %1165 = vmatpush.bf16.msra.mxu0 %v1144
        %1166 = vmatpush.bf16.msra.mxu0 %v1143
        %1167 = vmatmul.bf16.gmra.mxu0 %v1093
        %v1168 = vpop.f32.mrf.mxu0
        %v1169 = vadd.f32 0.0, %v1168
        %v1170 = vpop.f32.mrf.mxu0
        %v1171 = vadd.f32 0.0, %v1170
        %1172 = vdwg.mxu0
        %v1173 = vadd.f32 %v1089, %v1169
        %v1174 = vadd.f32 %v1091, %v1171
        %v1175 = vld [vmem:[%s498] sm:$0x1]
        %v1177 = vperm.slane %v1175, 0
        %v1179 = vadd.f32 %v1173, %v1177
        %v1180 = vadd.f32 %v1174, %v1177
        %v1181 = vadd.f32 %v607, %v1179
        %v1182 = vadd.f32 %v608, %v1180
        %1183 = vst [vmem:[#allocation2] sm:$0xff] %v1181
        %1184 = vst [vmem:[#allocation2 + $0x8] sm:$0xff] %v1182
        %p1185 = scmp.eq.s32.totalorder %s32, 3
        // Predicated region
        $region73: #{tpu_custom_call.1} parent=59 // pred_check
          %p1186 = pneg %p1185
        $region74: #{tpu_custom_call.1} parent=59 // pred_check_branch
          %1188 = sbr.rel (%p1186) target = $region76
        $region75: #{tpu_custom_call.1} parent=59 // pred_region
          %v1189 = vld [vmem:[#allocation2] sm:$0xff]
          %v1190 = vld [vmem:[#allocation2 + $0x8] sm:$0xff]
          %v1191 = vld [vmem:[%s8] sm:$0xff]
          %v1192 = vld [vmem:[%s8 + $0x8] sm:$0xff]
          %v1193 = vld [vmem:[%s8 + $0x10] sm:$0xff]
          %v1194 = vld [vmem:[%s8 + $0x18] sm:$0xff]
          %v1195 = vld [vmem:[%s8 + $0x20] sm:$0xff]
          %v1196 = vld [vmem:[%s8 + $0x28] sm:$0xff]
          %v1197 = vld [vmem:[%s8 + $0x30] sm:$0xff]
          %v1198 = vld [vmem:[%s8 + $0x38] sm:$0xff]
          %v1199 = vld [vmem:[%s8 + $0x40] sm:$0xff]
          %v1200 = vld [vmem:[%s8 + $0x48] sm:$0xff]
          %v1201 = vld [vmem:[%s8 + $0x50] sm:$0xff]
          %v1202 = vld [vmem:[%s8 + $0x58] sm:$0xff]
          %v1203 = vld [vmem:[%s8 + $0x60] sm:$0xff]
          %v1204 = vld [vmem:[%s8 + $0x68] sm:$0xff]
          %v1205 = vld [vmem:[%s8 + $0x70] sm:$0xff]
          %v1206 = vld [vmem:[%s8 + $0x78] sm:$0xff]
          %v1207 = vld [vmem:[%s9] sm:$0x1]
          %v1209 = vperm.slane %v1207, 0
          %1211 = vmatpush.msra.mxu0 %v1206
          %1212 = vmatpush.msra.mxu0 %v1205
          %1213 = vmatpush.msra.mxu0 %v1204
          %1214 = vmatpush.msra.mxu0 %v1203
          %1215 = vmatpush.msra.mxu0 %v1202
          %1216 = vmatpush.msra.mxu0 %v1201
          %1217 = vmatpush.msra.mxu0 %v1200
          %1218 = vmatpush.msra.mxu0 %v1199
          %1219 = vmatpush.msra.mxu0 %v1198
          %1220 = vmatpush.msra.mxu0 %v1197
          %1221 = vmatpush.msra.mxu0 %v1196
          %1222 = vmatpush.msra.mxu0 %v1195
          %1223 = vmatpush.msra.mxu0 %v1194
          %1224 = vmatpush.msra.mxu0 %v1193
          %1225 = vmatpush.msra.mxu0 %v1192
          %1226 = vmatpush.msra.mxu0 %v1191
          %1227 = vmatmul.f32.gmra.mxu0 %v1189
          %v1228 = vpop.f32.mrf.mxu0
          %v1229 = vadd.f32 %v1209, %v1228
          %1230 = vmatmul.f32.gmra.mxu0 %v1190
          %v1231 = vpop.f32.mrf.mxu0
          %v1232 = vadd.f32 %v1209, %v1231
          %1233 = vdwg.mxu0
          %v1234 = vlaneseq
          %v1235 = vand.u32 %v1234, 127
          %vm1236 = vcmp.eq.s32.totalorder %v530, 0
          %vm1237 = vcmp.eq.s32.totalorder %v531, 0
          %v1238 = vsel %vm1236, 0.0, %v1229
          %v1239 = vsel %vm1237, 0.0, %v1232
          %vm1240 = vcmp.eq.s32.totalorder %v530, 15
          %vm1241 = vcmp.eq.s32.totalorder %v531, 15
          %vm1242 = vcmp.eq.s32.totalorder %v1235, 0
          %v1243 = vsel %vm1242, 600.0, 0.0
          %v1244 = vsel %vm1240, %v1243, %v1238
          %v1245 = vsel %vm1241, %v1243, %v1239
          %vm1246 = vcmask 15360
          %1247 = vst.msk [vmem:[%s503] sm:$0xff] %vm1246, %v1244
          %1248 = vst.msk [vmem:[%s503 + $0x8] sm:$0xff] %vm1246, %v1245
        $region76: #{tpu_custom_call.1} parent=59 // pred_fallthru
          _
        %p1249 = scmp.lt.s32.totalorder %s31, 1
        %s1250 = scalar_select %p1249, %s31, 1
        %s1251 = smul.addr %s1250, 2
        %s1252 = smul.addr %s1251, 8
        %s1253 = scalar_lea.vmem %s10, %s1252
        // Predicated region
        $region77: #{tpu_custom_call.1} parent=59 // pred_check
          %p1254 = pneg %p297
        $region78: #{tpu_custom_call.1} parent=59 // pred_check_branch
          %1256 = sbr.rel (%p1254) target = $region80
        $region79: #{tpu_custom_call.1} parent=59 // pred_region
          _
        $region80: #{tpu_custom_call.1} parent=59 // pred_fallthru
          _
      $region60: #{tpu_custom_call.1} parent=5 // pred_fallthru
        _
      %p1257 = scmp.le.s32.totalorder 2, %s22
      // Predicated region
      $region81: #{tpu_custom_call.1} parent=5 // pred_check
        %p1258 = pneg %p1257
      $region82: #{tpu_custom_call.1} parent=5 // pred_check_branch
        %1260 = sbr.rel (%p1258) target = $region84
      $region83: #{tpu_custom_call.1} parent=5 // pred_region
        %s1261 = ssub.s32 %s22, 2
        // Predicated region
        $region85: #{tpu_custom_call.1} parent=83 // pred_check
          %p1262 = pneg %p303
        $region86: #{tpu_custom_call.1} parent=83 // pred_check_branch
          %1264 = sbr.rel (%p1262) target = $region88
        $region87: #{tpu_custom_call.1} parent=83 // pred_region
          %p1265 = scmp.lt.s32.totalorder %s33, 1
          %s1266 = scalar_select %p1265, %s33, 1
          %s1267 = smul.addr %s1266, 2
          %s1268 = smul.addr %s1267, 8
          %s1269 = scalar_lea.vmem %s10, %s1268
        $region88: #{tpu_custom_call.1} parent=83 // pred_fallthru
          _
      $region84: #{tpu_custom_call.1} parent=5 // pred_fallthru
        _
    $region6: #{tpu_custom_call.1} parent=1 // loop_footer
      %s26 = sadd.s32 1, %s22
    $region7: #{tpu_custom_call.1} parent=1 // loop_footer_branch
      %21 = sbr.rel target = $region3
    $region8: #{tpu_custom_call.1} parent=1 // loop_exit
      _
    %1270 = vsyncpa [#allocation4], 1
    %s1271 = scalar_lea.sflag [#allocation4], 1
    %1272 = vsyncpa %s1271, 1
    %1273 = vsyncpa [#allocation6], 1
    %s1274 = scalar_lea.sflag [#allocation6], 1
    %1275 = vsyncpa %s1274, 1

</llo_original>
